<compile_context>
chip_gen: v7x
topology: tpu7x:2x2x1
jax: 0.10.0
libtpu: 0.0.40
codegen_flags: <defaults>
</compile_context>

<pallas_src>
import functools

import jax
import jax.numpy as jnp
from jax.experimental import pallas as pl
from jax.experimental.pallas import tpu as pltpu

KSIZE = 7   # SAM conv kernel size
PAD = 3     # SAM conv padding


def _tree_sum(terms):
    """Balanced pairwise sum — keeps add chains short so the VPU can fill slots."""
    terms = list(terms)
    while len(terms) > 1:
        nxt = [terms[i] + terms[i + 1] for i in range(0, len(terms) - 1, 2)]
        if len(terms) % 2:
            nxt.append(terms[-1])
        terms = nxt
    return terms[0]


def _shift_zfill(m, d):
    """result[:, p] = m[:, p + d], zero outside [0, HW) (zero fill = padding)."""
    if d == 0:
        return m
    z = jnp.zeros((m.shape[0], abs(d)), m.dtype)
    if d > 0:
        return jnp.concatenate([m[:, d:], z], axis=1)
    return jnp.concatenate([z, m[:, :d]], axis=1)


def cbam_sequential_kernel(x_ref, w1t_ref, b1_ref, w2t_ref, b2_ref, wsam_ref,
                           out_ref, *, W):
    """One batch tile of CBAM (sequential fusion), lane-dense layout.

    x_ref   : (Bt, C, H*W)  input block (VMEM), lane axis = H*W
    w1t_ref : (C, Cr)       CAM bottleneck conv1 weight, transposed
    b1_ref  : (1, Cr)       CAM bottleneck conv1 bias
    w2t_ref : (Cr, C)       CAM bottleneck conv2 weight, transposed
    b2_ref  : (1, C)        CAM bottleneck conv2 bias
    wsam_ref: (2, 49)       SAM 7x7 conv weight (flattened), in SMEM
    out_ref : (Bt, C, H*W)  output block
    """
    Bt, C, HW = x_ref.shape
    x = x_ref[...]                                   # keep input dtype

    # ---------------- CAM: channel attention (MXU bottleneck) ----------------
    mx = jnp.max(x, axis=2).astype(jnp.float32)                      # (Bt, C)
    av = jnp.sum(x, axis=2, dtype=jnp.float32) * (1.0 / HW)          # (Bt, C)
    pools = jnp.concatenate([mx, av], axis=0)                        # (2Bt, C)

    hid = jnp.maximum(
        jnp.dot(pools, w1t_ref[...], preferred_element_type=jnp.float32)
        + b1_ref[...], 0.0)                                          # (2Bt, Cr)
    o = (jnp.dot(hid, w2t_ref[...], preferred_element_type=jnp.float32)
         + b2_ref[...])                                              # (2Bt, C)
    att = jax.nn.sigmoid(o[:Bt] + o[Bt:])                            # (Bt, C)
    gain_c = (1.0 + att).astype(x.dtype)

    # sequential fusion, fused algebra: CAM(x) * x == x*x*(1+att)
    cam = x * x * gain_c[:, :, None]                                 # (Bt, C, HW)

    # ---------------- SAM: spatial attention on cam ----------------
    mxc = jnp.max(cam, axis=1).astype(jnp.float32)                   # (Bt, HW)
    avc = jnp.sum(cam, axis=1, dtype=jnp.float32) * (1.0 / C)        # (Bt, HW)
    maps = jnp.concatenate([mxc, avc], axis=0)                       # (2Bt, HW)

    # Hoisted per-tap weight columns: rows < Bt use the max-channel weight,
    # rows >= Bt the avg-channel weight.  Built once, outside the tap loops.
    halfrow = jax.lax.broadcasted_iota(jnp.int32, (2 * Bt, 1), 0) < Bt
    wcols = [jnp.where(halfrow, wsam_ref[0, k], wsam_ref[1, k])
             for k in range(KSIZE * KSIZE)]                          # (2Bt,1) f32

    # 7 column-shifted + column-masked copies of `maps` (one select per dx);
    # the column mask also covers the row wrap-around of the flat shift.
    colx = jax.lax.broadcasted_iota(jnp.int32, (1, HW), 1) % W
    csh = {}
    for dx in range(-PAD, PAD + 1):
        if dx == 0:
            csh[dx] = maps
        else:
            ok = jnp.logical_and(colx + dx >= 0, colx + dx < W)
            csh[dx] = jnp.where(ok, _shift_zfill(maps, dx), 0.0)

    # 7x7 conv by linearity: per kernel row, weight-sum the 7 column shifts
    # first, then apply a single flat row shift by dy*W to the partial sum
    # (zero fill handles the row padding; columns keep their dx mask since a
    # dy*W shift moves whole rows).
    row_terms = []
    for ky in range(KSIZE):
        dy = ky - PAD
        if abs(dy) * W >= HW:
            continue        # kernel row lies entirely in the padding (H <= 3)
        s_dy = _tree_sum([wcols[ky * KSIZE + kx] * csh[kx - PAD]
                          for kx in range(KSIZE)])                   # (2Bt, HW)
        row_terms.append(_shift_zfill(s_dy, dy * W))
    acc = _tree_sum(row_terms)                                       # (2Bt, HW)

    conv = acc[:Bt] + acc[Bt:]                                       # (Bt, HW)
    gain_s = (1.0 + jax.nn.sigmoid(conv)).astype(x.dtype)            # (Bt, HW)

    # sequential fusion: cam * SAM(cam) == cam*cam*(1+smap)
    out_ref[...] = (cam * cam * gain_s[:, None, :]).astype(out_ref.dtype)


def _vmem_capacity_bytes():
    """Per-TensorCore VMEM capacity; conservative fallback = v7x (64 MiB)."""
    try:
        info = pltpu.get_tpu_info()
        cap = getattr(info, "vmem_capacity_bytes", None)
        if cap:
            return int(cap)
    except Exception:
        pass
    return 64 << 20


def cbam_pallas(x, w1, b1, w2, b2, wsam, *, batch_tile=None):
    """x: (B, C, H, W); w1: (Cr, C); b1: (Cr,); w2: (C, Cr); b2: (C,); wsam: (1, 2, 7, 7)."""
    B, C, H, W = x.shape
    Cr = w1.shape[0]
    HW = H * W

    # lane-dense view of the big tensors; small weights stored lane-major.
    x2 = x.reshape(B, C, HW)
    w1t = jnp.transpose(w1).astype(jnp.float32)      # (C, Cr)
    w2t = jnp.transpose(w2).astype(jnp.float32)      # (Cr, C)
    b1r = b1.reshape(1, Cr).astype(jnp.float32)
    b2r = b2.reshape(1, C).astype(jnp.float32)
    wsam2 = wsam.reshape(2, KSIZE * KSIZE).astype(jnp.float32)   # SMEM scalars

    # --- VMEM-aware batch tiling (works for 64 MiB v7x and 128 MiB v5e/v6e) --
    vmem_cap = _vmem_capacity_bytes()
    elem_bytes = C * HW * x.dtype.itemsize
    # Resident set is ~8x the block (in/out double buffers + the cam temporary
    # + f32 SAM intermediates); leave a few MiB of slack.
    block_cap = max(4 << 20, min(16 << 20, (vmem_cap - (8 << 20)) // 8))

    if batch_tile is None:
        bt = 1
        # Keep >= 2 grid steps so the "parallel" batch axis can shard across
        # both v7x TensorCores (no effect on v5e/v6e: single TC per chip).
        for cand in range(1, max(1, B // 2) + 1):
            if B % cand == 0 and cand * elem_bytes <= block_cap:
                bt = cand
    else:
        bt = batch_tile
    if B % bt != 0:
        raise ValueError(f"batch_tile {bt} must divide batch {B}")
    # TODO(synk): if even bt=1 exceeds block_cap (very large C*H*W on v7x),
    #             split H into a second grid axis with a 3-row halo for SAM.

    block_bytes = bt * elem_bytes
    vmem_limit = int(max(32 << 20,
                         min(vmem_cap - (8 << 20),
                             10 * block_bytes + (4 << 20))))

    grid_spec = pltpu.PrefetchScalarGridSpec(
        num_scalar_prefetch=0,
        grid=(B // bt,),
        in_specs=[
            pl.BlockSpec((bt, C, HW), lambda b: (b, 0, 0)),
            pl.BlockSpec((C, Cr), lambda b: (0, 0)),
            pl.BlockSpec((1, Cr), lambda b: (0, 0)),
            pl.BlockSpec((Cr, C), lambda b: (0, 0)),
            pl.BlockSpec((1, C), lambda b: (0, 0)),
            pl.BlockSpec(memory_space=pltpu.MemorySpace.SMEM),
        ],
        out_specs=pl.BlockSpec((bt, C, HW), lambda b: (b, 0, 0)),
    )
    out2 = pl.pallas_call(
        functools.partial(cbam_sequential_kernel, W=W),
        out_shape=jax.ShapeDtypeStruct((B, C, HW), x.dtype),
        grid_spec=grid_spec,
        compiler_params=pltpu.CompilerParams(
            dimension_semantics=("parallel",),       # batch steps independent
            vmem_limit_bytes=vmem_limit),
    )(x2, w1t, b1r, w2t, b2r, wsam2)
    return out2.reshape(B, C, H, W)


def cbam_ref(x, w1, b1, w2, b2, wsam):
    """Pure-JAX reference mirroring the PyTorch forward (method='sequential')."""
    hp = jax.lax.Precision.HIGHEST
    # CAM
    mx = jnp.max(x, axis=(2, 3))          # (B, C)
    av = jnp.mean(x, axis=(2, 3))         # (B, C)

    def bottleneck(p):
        h = jax.nn.relu(jnp.dot(p, w1.T, precision=hp) + b1)
        return jnp.dot(h, w2.T, precision=hp) + b2

    att = jax.nn.sigmoid(bottleneck(mx) + bottleneck(av))[:, :, None, None]
    cam = (x + att * x) * x
    # SAM
    mxc = jnp.max(cam, axis=1, keepdims=True)
    avc = jnp.mean(cam, axis=1, keepdims=True)
    concat = jnp.concatenate([mxc, avc], axis=1)      # (B, 2, H, W)
    conv = jax.lax.conv_general_dilated(
        concat, wsam, window_strides=(1, 1), padding=[(PAD, PAD), (PAD, PAD)],
        dimension_numbers=("NCHW", "OIHW", "NCHW"), precision=hp)
    smap = jax.nn.sigmoid(conv)
    return cam * (cam + smap * cam)


if __name__ == "__main__":
    B, C, H, W, r = 2, 8, 16, 16, 2
    Cr = C // r

    key = jax.random.PRNGKey(0)
    k1, k2, k3, k4, k5, k6 = jax.random.split(key, 6)
    x = jax.random.normal(k1, (B, C, H, W), jnp.float32)
    # Deterministic synthetic parameters (module __init__ shapes, 1x1 convs squeezed):
    w1 = jax.random.normal(k2, (Cr, C), jnp.float32) * 0.2     # CAM conv1 weight
    b1 = jax.random.normal(k3, (Cr,), jnp.float32) * 0.1       # CAM conv1 bias
    w2 = jax.random.normal(k4, (C, Cr), jnp.float32) * 0.2     # CAM conv2 weight
    b2 = jax.random.normal(k5, (C,), jnp.float32) * 0.1        # CAM conv2 bias
    wsam = jax.random.normal(k6, (1, 2, KSIZE, KSIZE), jnp.float32) * 0.1  # SAM conv (bias=False)

    y = cbam_pallas(x, w1, b1, w2, b2, wsam)
    jax.block_until_ready(y)

    y_ref = cbam_ref(x, w1, b1, w2, b2, wsam)
    assert y.shape == x.shape
    max_err = float(jnp.max(jnp.abs(y - y_ref)))
    # Tolerance: the only structural divergence from the f32/HIGHEST reference
    # is the default-precision MXU path on the tiny CAM bottleneck dots
    # (bf16-rounded operands, f32 accumulation), applied per the perf review.
    assert jnp.allclose(y, y_ref, rtol=2e-2, atol=2e-2), f"max abs err = {max_err}"
    print("KERNEL_OK")
</pallas_src>

<mosaic_0001>
module attributes {stable_mosaic.version = 11 : i64} {
  func.func @cbam_sequential_kernel(%arg0: i32, %arg1: memref<1x8x256xf32, #tpu.memory_space<vmem>>, %arg2: memref<8x4xf32, #tpu.memory_space<vmem>>, %arg3: memref<1x4xf32, #tpu.memory_space<vmem>>, %arg4: memref<4x8xf32, #tpu.memory_space<vmem>>, %arg5: memref<1x8xf32, #tpu.memory_space<vmem>>, %arg6: memref<2x49xf32, #tpu.memory_space<smem>>, %arg7: memref<1x8x256xf32, #tpu.memory_space<vmem>>) attributes {dimension_semantics = [#tpu.dimension_semantics<parallel>], iteration_bounds = array<i64: 2>, scalar_prefetch = 0 : i64, scratch_operands = 0 : i64, tpu.core_type = #tpu.core_type<tc>, window_params = [{transform_indices = @transform_0, window_bounds = array<i64: 1, 8, 256>}, {pipeline_mode = #tpu.pipeline_mode<synchronous>, transform_indices = @transform_1, window_bounds = array<i64: 8, 4>}, {pipeline_mode = #tpu.pipeline_mode<synchronous>, transform_indices = @transform_2, window_bounds = array<i64: 1, 4>}, {pipeline_mode = #tpu.pipeline_mode<synchronous>, transform_indices = @transform_3, window_bounds = array<i64: 4, 8>}, {pipeline_mode = #tpu.pipeline_mode<synchronous>, transform_indices = @transform_4, window_bounds = array<i64: 1, 8>}, {transform_indices = @transform_5, window_bounds = array<i64: 2, 49>}, {transform_indices = @transform_6, window_bounds = array<i64: 1, 8, 256>}]} {
    %c0 = arith.constant 0 : index
    %c0_0 = arith.constant 0 : index
    %c0_1 = arith.constant 0 : index
    %0 = vector.load %arg1[%c0, %c0_0, %c0_1] : memref<1x8x256xf32, #tpu.memory_space<vmem>>, vector<1x8x256xf32>
    %cst = arith.constant dense<0xFF800000> : vector<1x8xf32>
    %1 = vector.multi_reduction <maximumf>, %0, %cst [2] : vector<1x8x256xf32> to vector<1x8xf32>
    %cst_2 = arith.constant dense<0.000000e+00> : vector<1x8xf32>
    %2 = vector.multi_reduction <add>, %0, %cst_2 [2] : vector<1x8x256xf32> to vector<1x8xf32>
    %cst_3 = arith.constant 3.906250e-03 : f32
    %3 = vector.broadcast %cst_3 : f32 to vector<1x8xf32>
    %4 = arith.mulf %2, %3 : vector<1x8xf32>
    %5 = tpu.concatenate %1, %4 in 0 : vector<1x8xf32>, vector<1x8xf32> -> vector<2x8xf32>
    %c0_4 = arith.constant 0 : index
    %c0_5 = arith.constant 0 : index
    %6 = vector.load %arg2[%c0_4, %c0_5] : memref<8x4xf32, #tpu.memory_space<vmem>>, vector<8x4xf32>
    %cst_6 = arith.constant dense<0.000000e+00> : vector<2x4xf32>
    %7 = tpu.matmul %5, %6, %cst_6 {dimension_numbers = #tpu.dot_dimension_numbers<[1], [0], [0], [1], [0, 0, 1, 1], [], []>} : vector<2x8xf32>, vector<8x4xf32>, vector<2x4xf32> -> vector<2x4xf32>
    %c0_7 = arith.constant 0 : index
    %c0_8 = arith.constant 0 : index
    %8 = vector.load %arg3[%c0_7, %c0_8] : memref<1x4xf32, #tpu.memory_space<vmem>>, vector<1x4xf32>
    %9 = vector.broadcast %8 : vector<1x4xf32> to vector<2x4xf32>
    %10 = arith.addf %7, %9 : vector<2x4xf32>
    %cst_9 = arith.constant 0.000000e+00 : f32
    %11 = vector.broadcast %cst_9 : f32 to vector<2x4xf32>
    %12 = arith.maximumf %10, %11 : vector<2x4xf32>
    %c0_10 = arith.constant 0 : index
    %c0_11 = arith.constant 0 : index
    %13 = vector.load %arg4[%c0_10, %c0_11] : memref<4x8xf32, #tpu.memory_space<vmem>>, vector<4x8xf32>
    %cst_12 = arith.constant dense<0.000000e+00> : vector<2x8xf32>
    %14 = tpu.matmul %12, %13, %cst_12 {dimension_numbers = #tpu.dot_dimension_numbers<[1], [0], [0], [1], [0, 0, 1, 1], [], []>} : vector<2x4xf32>, vector<4x8xf32>, vector<2x8xf32> -> vector<2x8xf32>
    %c0_13 = arith.constant 0 : index
    %c0_14 = arith.constant 0 : index
    %15 = vector.load %arg5[%c0_13, %c0_14] : memref<1x8xf32, #tpu.memory_space<vmem>>, vector<1x8xf32>
    %16 = vector.broadcast %15 : vector<1x8xf32> to vector<2x8xf32>
    %17 = arith.addf %14, %16 : vector<2x8xf32>
    %18 = vector.extract_strided_slice %17 {offsets = [0, 0], sizes = [1, 8], strides = [1, 1]} : vector<2x8xf32> to vector<1x8xf32>
    %19 = vector.extract_strided_slice %17 {offsets = [1, 0], sizes = [1, 8], strides = [1, 1]} : vector<2x8xf32> to vector<1x8xf32>
    %20 = arith.addf %18, %19 : vector<1x8xf32>
    %21 = arith.negf %20 : vector<1x8xf32>
    %22 = math.exp %21 : vector<1x8xf32>
    %cst_15 = arith.constant 1.000000e+00 : f32
    %23 = vector.broadcast %cst_15 : f32 to vector<1x8xf32>
    %24 = arith.addf %23, %22 : vector<1x8xf32>
    %25 = arith.divf %23, %24 : vector<1x8xf32>
    %cst_16 = arith.constant 1.000000e+00 : f32
    %26 = vector.broadcast %cst_16 : f32 to vector<1x8xf32>
    %27 = arith.addf %26, %25 : vector<1x8xf32>
    %28 = arith.mulf %0, %0 : vector<1x8x256xf32>
    %29 = vector.shape_cast %27 : vector<1x8xf32> to vector<1x8x1xf32>
    %30 = vector.broadcast %29 : vector<1x8x1xf32> to vector<1x8x256xf32>
    %31 = arith.mulf %28, %30 : vector<1x8x256xf32>
    %cst_17 = arith.constant dense<0xFF800000> : vector<1x256xf32>
    %32 = vector.multi_reduction <maximumf>, %31, %cst_17 [1] : vector<1x8x256xf32> to vector<1x256xf32>
    %cst_18 = arith.constant dense<0.000000e+00> : vector<1x256xf32>
    %33 = vector.multi_reduction <add>, %31, %cst_18 [1] : vector<1x8x256xf32> to vector<1x256xf32>
    %cst_19 = arith.constant 1.250000e-01 : f32
    %34 = vector.broadcast %cst_19 : f32 to vector<1x256xf32>
    %35 = arith.mulf %33, %34 : vector<1x256xf32>
    %36 = tpu.concatenate %32, %35 in 0 : vector<1x256xf32>, vector<1x256xf32> -> vector<2x256xf32>
    %37 = tpu.iota {dimensions = array<i32: 0>} : vector<2x1xi32>
    %c1_i32 = arith.constant 1 : i32
    %38 = vector.broadcast %c1_i32 : i32 to vector<2x1xi32>
    %39 = arith.cmpi slt, %37, %38 : vector<2x1xi32>
    %c0_20 = arith.constant 0 : index
    %c0_21 = arith.constant 0 : index
    %40 = memref.load %arg6[%c0_20, %c0_21] : memref<2x49xf32, #tpu.memory_space<smem>>
    %c1 = arith.constant 1 : index
    %c0_22 = arith.constant 0 : index
    %41 = memref.load %arg6[%c1, %c0_22] : memref<2x49xf32, #tpu.memory_space<smem>>
    %42 = vector.broadcast %40 : f32 to vector<2x1xf32>
    %43 = vector.broadcast %41 : f32 to vector<2x1xf32>
    %44 = arith.select %39, %42, %43 : vector<2x1xi1>, vector<2x1xf32>
    %c0_23 = arith.constant 0 : index
    %c1_24 = arith.constant 1 : index
    %45 = memref.load %arg6[%c0_23, %c1_24] : memref<2x49xf32, #tpu.memory_space<smem>>
    %c1_25 = arith.constant 1 : index
    %c1_26 = arith.constant 1 : index
    %46 = memref.load %arg6[%c1_25, %c1_26] : memref<2x49xf32, #tpu.memory_space<smem>>
    %47 = vector.broadcast %45 : f32 to vector<2x1xf32>
    %48 = vector.broadcast %46 : f32 to vector<2x1xf32>
    %49 = arith.select %39, %47, %48 : vector<2x1xi1>, vector<2x1xf32>
    %c0_27 = arith.constant 0 : index
    %c2 = arith.constant 2 : index
    %50 = memref.load %arg6[%c0_27, %c2] : memref<2x49xf32, #tpu.memory_space<smem>>
    %c1_28 = arith.constant 1 : index
    %c2_29 = arith.constant 2 : index
    %51 = memref.load %arg6[%c1_28, %c2_29] : memref<2x49xf32, #tpu.memory_space<smem>>
    %52 = vector.broadcast %50 : f32 to vector<2x1xf32>
    %53 = vector.broadcast %51 : f32 to vector<2x1xf32>
    %54 = arith.select %39, %52, %53 : vector<2x1xi1>, vector<2x1xf32>
    %c0_30 = arith.constant 0 : index
    %c3 = arith.constant 3 : index
    %55 = memref.load %arg6[%c0_30, %c3] : memref<2x49xf32, #tpu.memory_space<smem>>
    %c1_31 = arith.constant 1 : index
    %c3_32 = arith.constant 3 : index
    %56 = memref.load %arg6[%c1_31, %c3_32] : memref<2x49xf32, #tpu.memory_space<smem>>
    %57 = vector.broadcast %55 : f32 to vector<2x1xf32>
    %58 = vector.broadcast %56 : f32 to vector<2x1xf32>
    %59 = arith.select %39, %57, %58 : vector<2x1xi1>, vector<2x1xf32>
    %c0_33 = arith.constant 0 : index
    %c4 = arith.constant 4 : index
    %60 = memref.load %arg6[%c0_33, %c4] : memref<2x49xf32, #tpu.memory_space<smem>>
    %c1_34 = arith.constant 1 : index
    %c4_35 = arith.constant 4 : index
    %61 = memref.load %arg6[%c1_34, %c4_35] : memref<2x49xf32, #tpu.memory_space<smem>>
    %62 = vector.broadcast %60 : f32 to vector<2x1xf32>
    %63 = vector.broadcast %61 : f32 to vector<2x1xf32>
    %64 = arith.select %39, %62, %63 : vector<2x1xi1>, vector<2x1xf32>
    %c0_36 = arith.constant 0 : index
    %c5 = arith.constant 5 : index
    %65 = memref.load %arg6[%c0_36, %c5] : memref<2x49xf32, #tpu.memory_space<smem>>
    %c1_37 = arith.constant 1 : index
    %c5_38 = arith.constant 5 : index
    %66 = memref.load %arg6[%c1_37, %c5_38] : memref<2x49xf32, #tpu.memory_space<smem>>
    %67 = vector.broadcast %65 : f32 to vector<2x1xf32>
    %68 = vector.broadcast %66 : f32 to vector<2x1xf32>
    %69 = arith.select %39, %67, %68 : vector<2x1xi1>, vector<2x1xf32>
    %c0_39 = arith.constant 0 : index
    %c6 = arith.constant 6 : index
    %70 = memref.load %arg6[%c0_39, %c6] : memref<2x49xf32, #tpu.memory_space<smem>>
    %c1_40 = arith.constant 1 : index
    %c6_41 = arith.constant 6 : index
    %71 = memref.load %arg6[%c1_40, %c6_41] : memref<2x49xf32, #tpu.memory_space<smem>>
    %72 = vector.broadcast %70 : f32 to vector<2x1xf32>
    %73 = vector.broadcast %71 : f32 to vector<2x1xf32>
    %74 = arith.select %39, %72, %73 : vector<2x1xi1>, vector<2x1xf32>
    %c0_42 = arith.constant 0 : index
    %c7 = arith.constant 7 : index
    %75 = memref.load %arg6[%c0_42, %c7] : memref<2x49xf32, #tpu.memory_space<smem>>
    %c1_43 = arith.constant 1 : index
    %c7_44 = arith.constant 7 : index
    %76 = memref.load %arg6[%c1_43, %c7_44] : memref<2x49xf32, #tpu.memory_space<smem>>
    %77 = vector.broadcast %75 : f32 to vector<2x1xf32>
    %78 = vector.broadcast %76 : f32 to vector<2x1xf32>
    %79 = arith.select %39, %77, %78 : vector<2x1xi1>, vector<2x1xf32>
    %c0_45 = arith.constant 0 : index
    %c8 = arith.constant 8 : index
    %80 = memref.load %arg6[%c0_45, %c8] : memref<2x49xf32, #tpu.memory_space<smem>>
    %c1_46 = arith.constant 1 : index
    %c8_47 = arith.constant 8 : index
    %81 = memref.load %arg6[%c1_46, %c8_47] : memref<2x49xf32, #tpu.memory_space<smem>>
    %82 = vector.broadcast %80 : f32 to vector<2x1xf32>
    %83 = vector.broadcast %81 : f32 to vector<2x1xf32>
    %84 = arith.select %39, %82, %83 : vector<2x1xi1>, vector<2x1xf32>
    %c0_48 = arith.constant 0 : index
    %c9 = arith.constant 9 : index
    %85 = memref.load %arg6[%c0_48, %c9] : memref<2x49xf32, #tpu.memory_space<smem>>
    %c1_49 = arith.constant 1 : index
    %c9_50 = arith.constant 9 : index
    %86 = memref.load %arg6[%c1_49, %c9_50] : memref<2x49xf32, #tpu.memory_space<smem>>
    %87 = vector.broadcast %85 : f32 to vector<2x1xf32>
    %88 = vector.broadcast %86 : f32 to vector<2x1xf32>
    %89 = arith.select %39, %87, %88 : vector<2x1xi1>, vector<2x1xf32>
    %c0_51 = arith.constant 0 : index
    %c10 = arith.constant 10 : index
    %90 = memref.load %arg6[%c0_51, %c10] : memref<2x49xf32, #tpu.memory_space<smem>>
    %c1_52 = arith.constant 1 : index
    %c10_53 = arith.constant 10 : index
    %91 = memref.load %arg6[%c1_52, %c10_53] : memref<2x49xf32, #tpu.memory_space<smem>>
    %92 = vector.broadcast %90 : f32 to vector<2x1xf32>
    %93 = vector.broadcast %91 : f32 to vector<2x1xf32>
    %94 = arith.select %39, %92, %93 : vector<2x1xi1>, vector<2x1xf32>
    %c0_54 = arith.constant 0 : index
    %c11 = arith.constant 11 : index
    %95 = memref.load %arg6[%c0_54, %c11] : memref<2x49xf32, #tpu.memory_space<smem>>
    %c1_55 = arith.constant 1 : index
    %c11_56 = arith.constant 11 : index
    %96 = memref.load %arg6[%c1_55, %c11_56] : memref<2x49xf32, #tpu.memory_space<smem>>
    %97 = vector.broadcast %95 : f32 to vector<2x1xf32>
    %98 = vector.broadcast %96 : f32 to vector<2x1xf32>
    %99 = arith.select %39, %97, %98 : vector<2x1xi1>, vector<2x1xf32>
    %c0_57 = arith.constant 0 : index
    %c12 = arith.constant 12 : index
    %100 = memref.load %arg6[%c0_57, %c12] : memref<2x49xf32, #tpu.memory_space<smem>>
    %c1_58 = arith.constant 1 : index
    %c12_59 = arith.constant 12 : index
    %101 = memref.load %arg6[%c1_58, %c12_59] : memref<2x49xf32, #tpu.memory_space<smem>>
    %102 = vector.broadcast %100 : f32 to vector<2x1xf32>
    %103 = vector.broadcast %101 : f32 to vector<2x1xf32>
    %104 = arith.select %39, %102, %103 : vector<2x1xi1>, vector<2x1xf32>
    %c0_60 = arith.constant 0 : index
    %c13 = arith.constant 13 : index
    %105 = memref.load %arg6[%c0_60, %c13] : memref<2x49xf32, #tpu.memory_space<smem>>
    %c1_61 = arith.constant 1 : index
    %c13_62 = arith.constant 13 : index
    %106 = memref.load %arg6[%c1_61, %c13_62] : memref<2x49xf32, #tpu.memory_space<smem>>
    %107 = vector.broadcast %105 : f32 to vector<2x1xf32>
    %108 = vector.broadcast %106 : f32 to vector<2x1xf32>
    %109 = arith.select %39, %107, %108 : vector<2x1xi1>, vector<2x1xf32>
    %c0_63 = arith.constant 0 : index
    %c14 = arith.constant 14 : index
    %110 = memref.load %arg6[%c0_63, %c14] : memref<2x49xf32, #tpu.memory_space<smem>>
    %c1_64 = arith.constant 1 : index
    %c14_65 = arith.constant 14 : index
    %111 = memref.load %arg6[%c1_64, %c14_65] : memref<2x49xf32, #tpu.memory_space<smem>>
    %112 = vector.broadcast %110 : f32 to vector<2x1xf32>
    %113 = vector.broadcast %111 : f32 to vector<2x1xf32>
    %114 = arith.select %39, %112, %113 : vector<2x1xi1>, vector<2x1xf32>
    %c0_66 = arith.constant 0 : index
    %c15 = arith.constant 15 : index
    %115 = memref.load %arg6[%c0_66, %c15] : memref<2x49xf32, #tpu.memory_space<smem>>
    %c1_67 = arith.constant 1 : index
    %c15_68 = arith.constant 15 : index
    %116 = memref.load %arg6[%c1_67, %c15_68] : memref<2x49xf32, #tpu.memory_space<smem>>
    %117 = vector.broadcast %115 : f32 to vector<2x1xf32>
    %118 = vector.broadcast %116 : f32 to vector<2x1xf32>
    %119 = arith.select %39, %117, %118 : vector<2x1xi1>, vector<2x1xf32>
    %c0_69 = arith.constant 0 : index
    %c16 = arith.constant 16 : index
    %120 = memref.load %arg6[%c0_69, %c16] : memref<2x49xf32, #tpu.memory_space<smem>>
    %c1_70 = arith.constant 1 : index
    %c16_71 = arith.constant 16 : index
    %121 = memref.load %arg6[%c1_70, %c16_71] : memref<2x49xf32, #tpu.memory_space<smem>>
    %122 = vector.broadcast %120 : f32 to vector<2x1xf32>
    %123 = vector.broadcast %121 : f32 to vector<2x1xf32>
    %124 = arith.select %39, %122, %123 : vector<2x1xi1>, vector<2x1xf32>
    %c0_72 = arith.constant 0 : index
    %c17 = arith.constant 17 : index
    %125 = memref.load %arg6[%c0_72, %c17] : memref<2x49xf32, #tpu.memory_space<smem>>
    %c1_73 = arith.constant 1 : index
    %c17_74 = arith.constant 17 : index
    %126 = memref.load %arg6[%c1_73, %c17_74] : memref<2x49xf32, #tpu.memory_space<smem>>
    %127 = vector.broadcast %125 : f32 to vector<2x1xf32>
    %128 = vector.broadcast %126 : f32 to vector<2x1xf32>
    %129 = arith.select %39, %127, %128 : vector<2x1xi1>, vector<2x1xf32>
    %c0_75 = arith.constant 0 : index
    %c18 = arith.constant 18 : index
    %130 = memref.load %arg6[%c0_75, %c18] : memref<2x49xf32, #tpu.memory_space<smem>>
    %c1_76 = arith.constant 1 : index
    %c18_77 = arith.constant 18 : index
    %131 = memref.load %arg6[%c1_76, %c18_77] : memref<2x49xf32, #tpu.memory_space<smem>>
    %132 = vector.broadcast %130 : f32 to vector<2x1xf32>
    %133 = vector.broadcast %131 : f32 to vector<2x1xf32>
    %134 = arith.select %39, %132, %133 : vector<2x1xi1>, vector<2x1xf32>
    %c0_78 = arith.constant 0 : index
    %c19 = arith.constant 19 : index
    %135 = memref.load %arg6[%c0_78, %c19] : memref<2x49xf32, #tpu.memory_space<smem>>
    %c1_79 = arith.constant 1 : index
    %c19_80 = arith.constant 19 : index
    %136 = memref.load %arg6[%c1_79, %c19_80] : memref<2x49xf32, #tpu.memory_space<smem>>
    %137 = vector.broadcast %135 : f32 to vector<2x1xf32>
    %138 = vector.broadcast %136 : f32 to vector<2x1xf32>
    %139 = arith.select %39, %137, %138 : vector<2x1xi1>, vector<2x1xf32>
    %c0_81 = arith.constant 0 : index
    %c20 = arith.constant 20 : index
    %140 = memref.load %arg6[%c0_81, %c20] : memref<2x49xf32, #tpu.memory_space<smem>>
    %c1_82 = arith.constant 1 : index
    %c20_83 = arith.constant 20 : index
    %141 = memref.load %arg6[%c1_82, %c20_83] : memref<2x49xf32, #tpu.memory_space<smem>>
    %142 = vector.broadcast %140 : f32 to vector<2x1xf32>
    %143 = vector.broadcast %141 : f32 to vector<2x1xf32>
    %144 = arith.select %39, %142, %143 : vector<2x1xi1>, vector<2x1xf32>
    %c0_84 = arith.constant 0 : index
    %c21 = arith.constant 21 : index
    %145 = memref.load %arg6[%c0_84, %c21] : memref<2x49xf32, #tpu.memory_space<smem>>
    %c1_85 = arith.constant 1 : index
    %c21_86 = arith.constant 21 : index
    %146 = memref.load %arg6[%c1_85, %c21_86] : memref<2x49xf32, #tpu.memory_space<smem>>
    %147 = vector.broadcast %145 : f32 to vector<2x1xf32>
    %148 = vector.broadcast %146 : f32 to vector<2x1xf32>
    %149 = arith.select %39, %147, %148 : vector<2x1xi1>, vector<2x1xf32>
    %c0_87 = arith.constant 0 : index
    %c22 = arith.constant 22 : index
    %150 = memref.load %arg6[%c0_87, %c22] : memref<2x49xf32, #tpu.memory_space<smem>>
    %c1_88 = arith.constant 1 : index
    %c22_89 = arith.constant 22 : index
    %151 = memref.load %arg6[%c1_88, %c22_89] : memref<2x49xf32, #tpu.memory_space<smem>>
    %152 = vector.broadcast %150 : f32 to vector<2x1xf32>
    %153 = vector.broadcast %151 : f32 to vector<2x1xf32>
    %154 = arith.select %39, %152, %153 : vector<2x1xi1>, vector<2x1xf32>
    %c0_90 = arith.constant 0 : index
    %c23 = arith.constant 23 : index
    %155 = memref.load %arg6[%c0_90, %c23] : memref<2x49xf32, #tpu.memory_space<smem>>
    %c1_91 = arith.constant 1 : index
    %c23_92 = arith.constant 23 : index
    %156 = memref.load %arg6[%c1_91, %c23_92] : memref<2x49xf32, #tpu.memory_space<smem>>
    %157 = vector.broadcast %155 : f32 to vector<2x1xf32>
    %158 = vector.broadcast %156 : f32 to vector<2x1xf32>
    %159 = arith.select %39, %157, %158 : vector<2x1xi1>, vector<2x1xf32>
    %c0_93 = arith.constant 0 : index
    %c24 = arith.constant 24 : index
    %160 = memref.load %arg6[%c0_93, %c24] : memref<2x49xf32, #tpu.memory_space<smem>>
    %c1_94 = arith.constant 1 : index
    %c24_95 = arith.constant 24 : index
    %161 = memref.load %arg6[%c1_94, %c24_95] : memref<2x49xf32, #tpu.memory_space<smem>>
    %162 = vector.broadcast %160 : f32 to vector<2x1xf32>
    %163 = vector.broadcast %161 : f32 to vector<2x1xf32>
    %164 = arith.select %39, %162, %163 : vector<2x1xi1>, vector<2x1xf32>
    %c0_96 = arith.constant 0 : index
    %c25 = arith.constant 25 : index
    %165 = memref.load %arg6[%c0_96, %c25] : memref<2x49xf32, #tpu.memory_space<smem>>
    %c1_97 = arith.constant 1 : index
    %c25_98 = arith.constant 25 : index
    %166 = memref.load %arg6[%c1_97, %c25_98] : memref<2x49xf32, #tpu.memory_space<smem>>
    %167 = vector.broadcast %165 : f32 to vector<2x1xf32>
    %168 = vector.broadcast %166 : f32 to vector<2x1xf32>
    %169 = arith.select %39, %167, %168 : vector<2x1xi1>, vector<2x1xf32>
    %c0_99 = arith.constant 0 : index
    %c26 = arith.constant 26 : index
    %170 = memref.load %arg6[%c0_99, %c26] : memref<2x49xf32, #tpu.memory_space<smem>>
    %c1_100 = arith.constant 1 : index
    %c26_101 = arith.constant 26 : index
    %171 = memref.load %arg6[%c1_100, %c26_101] : memref<2x49xf32, #tpu.memory_space<smem>>
    %172 = vector.broadcast %170 : f32 to vector<2x1xf32>
    %173 = vector.broadcast %171 : f32 to vector<2x1xf32>
    %174 = arith.select %39, %172, %173 : vector<2x1xi1>, vector<2x1xf32>
    %c0_102 = arith.constant 0 : index
    %c27 = arith.constant 27 : index
    %175 = memref.load %arg6[%c0_102, %c27] : memref<2x49xf32, #tpu.memory_space<smem>>
    %c1_103 = arith.constant 1 : index
    %c27_104 = arith.constant 27 : index
    %176 = memref.load %arg6[%c1_103, %c27_104] : memref<2x49xf32, #tpu.memory_space<smem>>
    %177 = vector.broadcast %175 : f32 to vector<2x1xf32>
    %178 = vector.broadcast %176 : f32 to vector<2x1xf32>
    %179 = arith.select %39, %177, %178 : vector<2x1xi1>, vector<2x1xf32>
    %c0_105 = arith.constant 0 : index
    %c28 = arith.constant 28 : index
    %180 = memref.load %arg6[%c0_105, %c28] : memref<2x49xf32, #tpu.memory_space<smem>>
    %c1_106 = arith.constant 1 : index
    %c28_107 = arith.constant 28 : index
    %181 = memref.load %arg6[%c1_106, %c28_107] : memref<2x49xf32, #tpu.memory_space<smem>>
    %182 = vector.broadcast %180 : f32 to vector<2x1xf32>
    %183 = vector.broadcast %181 : f32 to vector<2x1xf32>
    %184 = arith.select %39, %182, %183 : vector<2x1xi1>, vector<2x1xf32>
    %c0_108 = arith.constant 0 : index
    %c29 = arith.constant 29 : index
    %185 = memref.load %arg6[%c0_108, %c29] : memref<2x49xf32, #tpu.memory_space<smem>>
    %c1_109 = arith.constant 1 : index
    %c29_110 = arith.constant 29 : index
    %186 = memref.load %arg6[%c1_109, %c29_110] : memref<2x49xf32, #tpu.memory_space<smem>>
    %187 = vector.broadcast %185 : f32 to vector<2x1xf32>
    %188 = vector.broadcast %186 : f32 to vector<2x1xf32>
    %189 = arith.select %39, %187, %188 : vector<2x1xi1>, vector<2x1xf32>
    %c0_111 = arith.constant 0 : index
    %c30 = arith.constant 30 : index
    %190 = memref.load %arg6[%c0_111, %c30] : memref<2x49xf32, #tpu.memory_space<smem>>
    %c1_112 = arith.constant 1 : index
    %c30_113 = arith.constant 30 : index
    %191 = memref.load %arg6[%c1_112, %c30_113] : memref<2x49xf32, #tpu.memory_space<smem>>
    %192 = vector.broadcast %190 : f32 to vector<2x1xf32>
    %193 = vector.broadcast %191 : f32 to vector<2x1xf32>
    %194 = arith.select %39, %192, %193 : vector<2x1xi1>, vector<2x1xf32>
    %c0_114 = arith.constant 0 : index
    %c31 = arith.constant 31 : index
    %195 = memref.load %arg6[%c0_114, %c31] : memref<2x49xf32, #tpu.memory_space<smem>>
    %c1_115 = arith.constant 1 : index
    %c31_116 = arith.constant 31 : index
    %196 = memref.load %arg6[%c1_115, %c31_116] : memref<2x49xf32, #tpu.memory_space<smem>>
    %197 = vector.broadcast %195 : f32 to vector<2x1xf32>
    %198 = vector.broadcast %196 : f32 to vector<2x1xf32>
    %199 = arith.select %39, %197, %198 : vector<2x1xi1>, vector<2x1xf32>
    %c0_117 = arith.constant 0 : index
    %c32 = arith.constant 32 : index
    %200 = memref.load %arg6[%c0_117, %c32] : memref<2x49xf32, #tpu.memory_space<smem>>
    %c1_118 = arith.constant 1 : index
    %c32_119 = arith.constant 32 : index
    %201 = memref.load %arg6[%c1_118, %c32_119] : memref<2x49xf32, #tpu.memory_space<smem>>
    %202 = vector.broadcast %200 : f32 to vector<2x1xf32>
    %203 = vector.broadcast %201 : f32 to vector<2x1xf32>
    %204 = arith.select %39, %202, %203 : vector<2x1xi1>, vector<2x1xf32>
    %c0_120 = arith.constant 0 : index
    %c33 = arith.constant 33 : index
    %205 = memref.load %arg6[%c0_120, %c33] : memref<2x49xf32, #tpu.memory_space<smem>>
    %c1_121 = arith.constant 1 : index
    %c33_122 = arith.constant 33 : index
    %206 = memref.load %arg6[%c1_121, %c33_122] : memref<2x49xf32, #tpu.memory_space<smem>>
    %207 = vector.broadcast %205 : f32 to vector<2x1xf32>
    %208 = vector.broadcast %206 : f32 to vector<2x1xf32>
    %209 = arith.select %39, %207, %208 : vector<2x1xi1>, vector<2x1xf32>
    %c0_123 = arith.constant 0 : index
    %c34 = arith.constant 34 : index
    %210 = memref.load %arg6[%c0_123, %c34] : memref<2x49xf32, #tpu.memory_space<smem>>
    %c1_124 = arith.constant 1 : index
    %c34_125 = arith.constant 34 : index
    %211 = memref.load %arg6[%c1_124, %c34_125] : memref<2x49xf32, #tpu.memory_space<smem>>
    %212 = vector.broadcast %210 : f32 to vector<2x1xf32>
    %213 = vector.broadcast %211 : f32 to vector<2x1xf32>
    %214 = arith.select %39, %212, %213 : vector<2x1xi1>, vector<2x1xf32>
    %c0_126 = arith.constant 0 : index
    %c35 = arith.constant 35 : index
    %215 = memref.load %arg6[%c0_126, %c35] : memref<2x49xf32, #tpu.memory_space<smem>>
    %c1_127 = arith.constant 1 : index
    %c35_128 = arith.constant 35 : index
    %216 = memref.load %arg6[%c1_127, %c35_128] : memref<2x49xf32, #tpu.memory_space<smem>>
    %217 = vector.broadcast %215 : f32 to vector<2x1xf32>
    %218 = vector.broadcast %216 : f32 to vector<2x1xf32>
    %219 = arith.select %39, %217, %218 : vector<2x1xi1>, vector<2x1xf32>
    %c0_129 = arith.constant 0 : index
    %c36 = arith.constant 36 : index
    %220 = memref.load %arg6[%c0_129, %c36] : memref<2x49xf32, #tpu.memory_space<smem>>
    %c1_130 = arith.constant 1 : index
    %c36_131 = arith.constant 36 : index
    %221 = memref.load %arg6[%c1_130, %c36_131] : memref<2x49xf32, #tpu.memory_space<smem>>
    %222 = vector.broadcast %220 : f32 to vector<2x1xf32>
    %223 = vector.broadcast %221 : f32 to vector<2x1xf32>
    %224 = arith.select %39, %222, %223 : vector<2x1xi1>, vector<2x1xf32>
    %c0_132 = arith.constant 0 : index
    %c37 = arith.constant 37 : index
    %225 = memref.load %arg6[%c0_132, %c37] : memref<2x49xf32, #tpu.memory_space<smem>>
    %c1_133 = arith.constant 1 : index
    %c37_134 = arith.constant 37 : index
    %226 = memref.load %arg6[%c1_133, %c37_134] : memref<2x49xf32, #tpu.memory_space<smem>>
    %227 = vector.broadcast %225 : f32 to vector<2x1xf32>
    %228 = vector.broadcast %226 : f32 to vector<2x1xf32>
    %229 = arith.select %39, %227, %228 : vector<2x1xi1>, vector<2x1xf32>
    %c0_135 = arith.constant 0 : index
    %c38 = arith.constant 38 : index
    %230 = memref.load %arg6[%c0_135, %c38] : memref<2x49xf32, #tpu.memory_space<smem>>
    %c1_136 = arith.constant 1 : index
    %c38_137 = arith.constant 38 : index
    %231 = memref.load %arg6[%c1_136, %c38_137] : memref<2x49xf32, #tpu.memory_space<smem>>
    %232 = vector.broadcast %230 : f32 to vector<2x1xf32>
    %233 = vector.broadcast %231 : f32 to vector<2x1xf32>
    %234 = arith.select %39, %232, %233 : vector<2x1xi1>, vector<2x1xf32>
    %c0_138 = arith.constant 0 : index
    %c39 = arith.constant 39 : index
    %235 = memref.load %arg6[%c0_138, %c39] : memref<2x49xf32, #tpu.memory_space<smem>>
    %c1_139 = arith.constant 1 : index
    %c39_140 = arith.constant 39 : index
    %236 = memref.load %arg6[%c1_139, %c39_140] : memref<2x49xf32, #tpu.memory_space<smem>>
    %237 = vector.broadcast %235 : f32 to vector<2x1xf32>
    %238 = vector.broadcast %236 : f32 to vector<2x1xf32>
    %239 = arith.select %39, %237, %238 : vector<2x1xi1>, vector<2x1xf32>
    %c0_141 = arith.constant 0 : index
    %c40 = arith.constant 40 : index
    %240 = memref.load %arg6[%c0_141, %c40] : memref<2x49xf32, #tpu.memory_space<smem>>
    %c1_142 = arith.constant 1 : index
    %c40_143 = arith.constant 40 : index
    %241 = memref.load %arg6[%c1_142, %c40_143] : memref<2x49xf32, #tpu.memory_space<smem>>
    %242 = vector.broadcast %240 : f32 to vector<2x1xf32>
    %243 = vector.broadcast %241 : f32 to vector<2x1xf32>
    %244 = arith.select %39, %242, %243 : vector<2x1xi1>, vector<2x1xf32>
    %c0_144 = arith.constant 0 : index
    %c41 = arith.constant 41 : index
    %245 = memref.load %arg6[%c0_144, %c41] : memref<2x49xf32, #tpu.memory_space<smem>>
    %c1_145 = arith.constant 1 : index
    %c41_146 = arith.constant 41 : index
    %246 = memref.load %arg6[%c1_145, %c41_146] : memref<2x49xf32, #tpu.memory_space<smem>>
    %247 = vector.broadcast %245 : f32 to vector<2x1xf32>
    %248 = vector.broadcast %246 : f32 to vector<2x1xf32>
    %249 = arith.select %39, %247, %248 : vector<2x1xi1>, vector<2x1xf32>
    %c0_147 = arith.constant 0 : index
    %c42 = arith.constant 42 : index
    %250 = memref.load %arg6[%c0_147, %c42] : memref<2x49xf32, #tpu.memory_space<smem>>
    %c1_148 = arith.constant 1 : index
    %c42_149 = arith.constant 42 : index
    %251 = memref.load %arg6[%c1_148, %c42_149] : memref<2x49xf32, #tpu.memory_space<smem>>
    %252 = vector.broadcast %250 : f32 to vector<2x1xf32>
    %253 = vector.broadcast %251 : f32 to vector<2x1xf32>
    %254 = arith.select %39, %252, %253 : vector<2x1xi1>, vector<2x1xf32>
    %c0_150 = arith.constant 0 : index
    %c43 = arith.constant 43 : index
    %255 = memref.load %arg6[%c0_150, %c43] : memref<2x49xf32, #tpu.memory_space<smem>>
    %c1_151 = arith.constant 1 : index
    %c43_152 = arith.constant 43 : index
    %256 = memref.load %arg6[%c1_151, %c43_152] : memref<2x49xf32, #tpu.memory_space<smem>>
    %257 = vector.broadcast %255 : f32 to vector<2x1xf32>
    %258 = vector.broadcast %256 : f32 to vector<2x1xf32>
    %259 = arith.select %39, %257, %258 : vector<2x1xi1>, vector<2x1xf32>
    %c0_153 = arith.constant 0 : index
    %c44 = arith.constant 44 : index
    %260 = memref.load %arg6[%c0_153, %c44] : memref<2x49xf32, #tpu.memory_space<smem>>
    %c1_154 = arith.constant 1 : index
    %c44_155 = arith.constant 44 : index
    %261 = memref.load %arg6[%c1_154, %c44_155] : memref<2x49xf32, #tpu.memory_space<smem>>
    %262 = vector.broadcast %260 : f32 to vector<2x1xf32>
    %263 = vector.broadcast %261 : f32 to vector<2x1xf32>
    %264 = arith.select %39, %262, %263 : vector<2x1xi1>, vector<2x1xf32>
    %c0_156 = arith.constant 0 : index
    %c45 = arith.constant 45 : index
    %265 = memref.load %arg6[%c0_156, %c45] : memref<2x49xf32, #tpu.memory_space<smem>>
    %c1_157 = arith.constant 1 : index
    %c45_158 = arith.constant 45 : index
    %266 = memref.load %arg6[%c1_157, %c45_158] : memref<2x49xf32, #tpu.memory_space<smem>>
    %267 = vector.broadcast %265 : f32 to vector<2x1xf32>
    %268 = vector.broadcast %266 : f32 to vector<2x1xf32>
    %269 = arith.select %39, %267, %268 : vector<2x1xi1>, vector<2x1xf32>
    %c0_159 = arith.constant 0 : index
    %c46 = arith.constant 46 : index
    %270 = memref.load %arg6[%c0_159, %c46] : memref<2x49xf32, #tpu.memory_space<smem>>
    %c1_160 = arith.constant 1 : index
    %c46_161 = arith.constant 46 : index
    %271 = memref.load %arg6[%c1_160, %c46_161] : memref<2x49xf32, #tpu.memory_space<smem>>
    %272 = vector.broadcast %270 : f32 to vector<2x1xf32>
    %273 = vector.broadcast %271 : f32 to vector<2x1xf32>
    %274 = arith.select %39, %272, %273 : vector<2x1xi1>, vector<2x1xf32>
    %c0_162 = arith.constant 0 : index
    %c47 = arith.constant 47 : index
    %275 = memref.load %arg6[%c0_162, %c47] : memref<2x49xf32, #tpu.memory_space<smem>>
    %c1_163 = arith.constant 1 : index
    %c47_164 = arith.constant 47 : index
    %276 = memref.load %arg6[%c1_163, %c47_164] : memref<2x49xf32, #tpu.memory_space<smem>>
    %277 = vector.broadcast %275 : f32 to vector<2x1xf32>
    %278 = vector.broadcast %276 : f32 to vector<2x1xf32>
    %279 = arith.select %39, %277, %278 : vector<2x1xi1>, vector<2x1xf32>
    %c0_165 = arith.constant 0 : index
    %c48 = arith.constant 48 : index
    %280 = memref.load %arg6[%c0_165, %c48] : memref<2x49xf32, #tpu.memory_space<smem>>
    %c1_166 = arith.constant 1 : index
    %c48_167 = arith.constant 48 : index
    %281 = memref.load %arg6[%c1_166, %c48_167] : memref<2x49xf32, #tpu.memory_space<smem>>
    %282 = vector.broadcast %280 : f32 to vector<2x1xf32>
    %283 = vector.broadcast %281 : f32 to vector<2x1xf32>
    %284 = arith.select %39, %282, %283 : vector<2x1xi1>, vector<2x1xf32>
    %285 = tpu.iota {dimensions = array<i32: 1>} : vector<1x256xi32>
    %c16_i32 = arith.constant 16 : i32
    %c0_i32 = arith.constant 0 : i32
    %286 = arith.cmpi eq, %c16_i32, %c0_i32 : i32
    %c1_i32_168 = arith.constant 1 : i32
    %287 = arith.select %286, %c1_i32_168, %c16_i32 : i32
    %288 = vector.broadcast %287 : i32 to vector<1x256xi32>
    %289 = arith.remsi %285, %288 : vector<1x256xi32>
    %c0_i32_169 = arith.constant 0 : i32
    %290 = vector.broadcast %c0_i32_169 : i32 to vector<1x256xi32>
    %291 = arith.cmpi ne, %289, %290 : vector<1x256xi32>
    %c0_i32_170 = arith.constant 0 : i32
    %292 = vector.broadcast %c0_i32_170 : i32 to vector<1x256xi32>
    %293 = arith.cmpi slt, %289, %292 : vector<1x256xi32>
    %c0_i32_171 = arith.constant 0 : i32
    %294 = arith.cmpi slt, %287, %c0_i32_171 : i32
    %295 = vector.broadcast %294 : i1 to vector<1x256xi1>
    %296 = vector.broadcast %295 : vector<1x256xi1> to vector<1x256xi1>
    %297 = arith.xori %293, %296 : vector<1x256xi1>
    %298 = arith.andi %297, %291 : vector<1x256xi1>
    %299 = vector.broadcast %287 : i32 to vector<1x256xi32>
    %300 = arith.addi %289, %299 : vector<1x256xi32>
    %301 = arith.select %298, %300, %289 : vector<1x256xi1>, vector<1x256xi32>
    %c-3_i32 = arith.constant -3 : i32
    %302 = vector.broadcast %c-3_i32 : i32 to vector<1x256xi32>
    %303 = arith.addi %301, %302 : vector<1x256xi32>
    %c0_i32_172 = arith.constant 0 : i32
    %304 = vector.broadcast %c0_i32_172 : i32 to vector<1x256xi32>
    %305 = arith.cmpi sge, %303, %304 : vector<1x256xi32>
    %c-3_i32_173 = arith.constant -3 : i32
    %306 = vector.broadcast %c-3_i32_173 : i32 to vector<1x256xi32>
    %307 = arith.addi %301, %306 : vector<1x256xi32>
    %c16_i32_174 = arith.constant 16 : i32
    %308 = vector.broadcast %c16_i32_174 : i32 to vector<1x256xi32>
    %309 = arith.cmpi slt, %307, %308 : vector<1x256xi32>
    %310 = arith.andi %305, %309 : vector<1x256xi1>
    %cst_175 = arith.constant 0.000000e+00 : f32
    %311 = vector.broadcast %cst_175 : f32 to vector<2x3xf32>
    %312 = vector.extract_strided_slice %36 {offsets = [0, 0], sizes = [2, 253], strides = [1, 1]} : vector<2x256xf32> to vector<2x253xf32>
    %313 = tpu.concatenate %311, %312 in 1 : vector<2x3xf32>, vector<2x253xf32> -> vector<2x256xf32>
    %cst_176 = arith.constant 0.000000e+00 : f32
    %314 = vector.shape_cast %310 : vector<1x256xi1> to vector<1x256xi1>
    %315 = vector.broadcast %314 : vector<1x256xi1> to vector<2x256xi1>
    %316 = vector.broadcast %cst_176 : f32 to vector<2x256xf32>
    %317 = arith.select %315, %313, %316 : vector<2x256xi1>, vector<2x256xf32>
    %c-2_i32 = arith.constant -2 : i32
    %318 = vector.broadcast %c-2_i32 : i32 to vector<1x256xi32>
    %319 = arith.addi %301, %318 : vector<1x256xi32>
    %c0_i32_177 = arith.constant 0 : i32
    %320 = vector.broadcast %c0_i32_177 : i32 to vector<1x256xi32>
    %321 = arith.cmpi sge, %319, %320 : vector<1x256xi32>
    %c-2_i32_178 = arith.constant -2 : i32
    %322 = vector.broadcast %c-2_i32_178 : i32 to vector<1x256xi32>
    %323 = arith.addi %301, %322 : vector<1x256xi32>
    %c16_i32_179 = arith.constant 16 : i32
    %324 = vector.broadcast %c16_i32_179 : i32 to vector<1x256xi32>
    %325 = arith.cmpi slt, %323, %324 : vector<1x256xi32>
    %326 = arith.andi %321, %325 : vector<1x256xi1>
    %cst_180 = arith.constant 0.000000e+00 : f32
    %327 = vector.broadcast %cst_180 : f32 to vector<2x2xf32>
    %328 = vector.extract_strided_slice %36 {offsets = [0, 0], sizes = [2, 254], strides = [1, 1]} : vector<2x256xf32> to vector<2x254xf32>
    %329 = tpu.concatenate %327, %328 in 1 : vector<2x2xf32>, vector<2x254xf32> -> vector<2x256xf32>
    %cst_181 = arith.constant 0.000000e+00 : f32
    %330 = vector.shape_cast %326 : vector<1x256xi1> to vector<1x256xi1>
    %331 = vector.broadcast %330 : vector<1x256xi1> to vector<2x256xi1>
    %332 = vector.broadcast %cst_181 : f32 to vector<2x256xf32>
    %333 = arith.select %331, %329, %332 : vector<2x256xi1>, vector<2x256xf32>
    %c-1_i32 = arith.constant -1 : i32
    %334 = vector.broadcast %c-1_i32 : i32 to vector<1x256xi32>
    %335 = arith.addi %301, %334 : vector<1x256xi32>
    %c0_i32_182 = arith.constant 0 : i32
    %336 = vector.broadcast %c0_i32_182 : i32 to vector<1x256xi32>
    %337 = arith.cmpi sge, %335, %336 : vector<1x256xi32>
    %c-1_i32_183 = arith.constant -1 : i32
    %338 = vector.broadcast %c-1_i32_183 : i32 to vector<1x256xi32>
    %339 = arith.addi %301, %338 : vector<1x256xi32>
    %c16_i32_184 = arith.constant 16 : i32
    %340 = vector.broadcast %c16_i32_184 : i32 to vector<1x256xi32>
    %341 = arith.cmpi slt, %339, %340 : vector<1x256xi32>
    %342 = arith.andi %337, %341 : vector<1x256xi1>
    %cst_185 = arith.constant 0.000000e+00 : f32
    %343 = vector.broadcast %cst_185 : f32 to vector<2x1xf32>
    %344 = vector.extract_strided_slice %36 {offsets = [0, 0], sizes = [2, 255], strides = [1, 1]} : vector<2x256xf32> to vector<2x255xf32>
    %345 = tpu.concatenate %343, %344 in 1 : vector<2x1xf32>, vector<2x255xf32> -> vector<2x256xf32>
    %cst_186 = arith.constant 0.000000e+00 : f32
    %346 = vector.shape_cast %342 : vector<1x256xi1> to vector<1x256xi1>
    %347 = vector.broadcast %346 : vector<1x256xi1> to vector<2x256xi1>
    %348 = vector.broadcast %cst_186 : f32 to vector<2x256xf32>
    %349 = arith.select %347, %345, %348 : vector<2x256xi1>, vector<2x256xf32>
    %c1_i32_187 = arith.constant 1 : i32
    %350 = vector.broadcast %c1_i32_187 : i32 to vector<1x256xi32>
    %351 = arith.addi %301, %350 : vector<1x256xi32>
    %c0_i32_188 = arith.constant 0 : i32
    %352 = vector.broadcast %c0_i32_188 : i32 to vector<1x256xi32>
    %353 = arith.cmpi sge, %351, %352 : vector<1x256xi32>
    %c1_i32_189 = arith.constant 1 : i32
    %354 = vector.broadcast %c1_i32_189 : i32 to vector<1x256xi32>
    %355 = arith.addi %301, %354 : vector<1x256xi32>
    %c16_i32_190 = arith.constant 16 : i32
    %356 = vector.broadcast %c16_i32_190 : i32 to vector<1x256xi32>
    %357 = arith.cmpi slt, %355, %356 : vector<1x256xi32>
    %358 = arith.andi %353, %357 : vector<1x256xi1>
    %cst_191 = arith.constant 0.000000e+00 : f32
    %359 = vector.broadcast %cst_191 : f32 to vector<2x1xf32>
    %360 = vector.extract_strided_slice %36 {offsets = [0, 1], sizes = [2, 255], strides = [1, 1]} : vector<2x256xf32> to vector<2x255xf32>
    %361 = tpu.concatenate %360, %359 in 1 : vector<2x255xf32>, vector<2x1xf32> -> vector<2x256xf32>
    %cst_192 = arith.constant 0.000000e+00 : f32
    %362 = vector.shape_cast %358 : vector<1x256xi1> to vector<1x256xi1>
    %363 = vector.broadcast %362 : vector<1x256xi1> to vector<2x256xi1>
    %364 = vector.broadcast %cst_192 : f32 to vector<2x256xf32>
    %365 = arith.select %363, %361, %364 : vector<2x256xi1>, vector<2x256xf32>
    %c2_i32 = arith.constant 2 : i32
    %366 = vector.broadcast %c2_i32 : i32 to vector<1x256xi32>
    %367 = arith.addi %301, %366 : vector<1x256xi32>
    %c0_i32_193 = arith.constant 0 : i32
    %368 = vector.broadcast %c0_i32_193 : i32 to vector<1x256xi32>
    %369 = arith.cmpi sge, %367, %368 : vector<1x256xi32>
    %c2_i32_194 = arith.constant 2 : i32
    %370 = vector.broadcast %c2_i32_194 : i32 to vector<1x256xi32>
    %371 = arith.addi %301, %370 : vector<1x256xi32>
    %c16_i32_195 = arith.constant 16 : i32
    %372 = vector.broadcast %c16_i32_195 : i32 to vector<1x256xi32>
    %373 = arith.cmpi slt, %371, %372 : vector<1x256xi32>
    %374 = arith.andi %369, %373 : vector<1x256xi1>
    %cst_196 = arith.constant 0.000000e+00 : f32
    %375 = vector.broadcast %cst_196 : f32 to vector<2x2xf32>
    %376 = vector.extract_strided_slice %36 {offsets = [0, 2], sizes = [2, 254], strides = [1, 1]} : vector<2x256xf32> to vector<2x254xf32>
    %377 = tpu.concatenate %376, %375 in 1 : vector<2x254xf32>, vector<2x2xf32> -> vector<2x256xf32>
    %cst_197 = arith.constant 0.000000e+00 : f32
    %378 = vector.shape_cast %374 : vector<1x256xi1> to vector<1x256xi1>
    %379 = vector.broadcast %378 : vector<1x256xi1> to vector<2x256xi1>
    %380 = vector.broadcast %cst_197 : f32 to vector<2x256xf32>
    %381 = arith.select %379, %377, %380 : vector<2x256xi1>, vector<2x256xf32>
    %c3_i32 = arith.constant 3 : i32
    %382 = vector.broadcast %c3_i32 : i32 to vector<1x256xi32>
    %383 = arith.addi %301, %382 : vector<1x256xi32>
    %c0_i32_198 = arith.constant 0 : i32
    %384 = vector.broadcast %c0_i32_198 : i32 to vector<1x256xi32>
    %385 = arith.cmpi sge, %383, %384 : vector<1x256xi32>
    %c3_i32_199 = arith.constant 3 : i32
    %386 = vector.broadcast %c3_i32_199 : i32 to vector<1x256xi32>
    %387 = arith.addi %301, %386 : vector<1x256xi32>
    %c16_i32_200 = arith.constant 16 : i32
    %388 = vector.broadcast %c16_i32_200 : i32 to vector<1x256xi32>
    %389 = arith.cmpi slt, %387, %388 : vector<1x256xi32>
    %390 = arith.andi %385, %389 : vector<1x256xi1>
    %cst_201 = arith.constant 0.000000e+00 : f32
    %391 = vector.broadcast %cst_201 : f32 to vector<2x3xf32>
    %392 = vector.extract_strided_slice %36 {offsets = [0, 3], sizes = [2, 253], strides = [1, 1]} : vector<2x256xf32> to vector<2x253xf32>
    %393 = tpu.concatenate %392, %391 in 1 : vector<2x253xf32>, vector<2x3xf32> -> vector<2x256xf32>
    %cst_202 = arith.constant 0.000000e+00 : f32
    %394 = vector.shape_cast %390 : vector<1x256xi1> to vector<1x256xi1>
    %395 = vector.broadcast %394 : vector<1x256xi1> to vector<2x256xi1>
    %396 = vector.broadcast %cst_202 : f32 to vector<2x256xf32>
    %397 = arith.select %395, %393, %396 : vector<2x256xi1>, vector<2x256xf32>
    %398 = vector.broadcast %44 : vector<2x1xf32> to vector<2x256xf32>
    %399 = arith.mulf %398, %317 : vector<2x256xf32>
    %400 = vector.broadcast %49 : vector<2x1xf32> to vector<2x256xf32>
    %401 = arith.mulf %400, %333 : vector<2x256xf32>
    %402 = vector.broadcast %54 : vector<2x1xf32> to vector<2x256xf32>
    %403 = arith.mulf %402, %349 : vector<2x256xf32>
    %404 = vector.broadcast %59 : vector<2x1xf32> to vector<2x256xf32>
    %405 = arith.mulf %404, %36 : vector<2x256xf32>
    %406 = vector.broadcast %64 : vector<2x1xf32> to vector<2x256xf32>
    %407 = arith.mulf %406, %365 : vector<2x256xf32>
    %408 = vector.broadcast %69 : vector<2x1xf32> to vector<2x256xf32>
    %409 = arith.mulf %408, %381 : vector<2x256xf32>
    %410 = vector.broadcast %74 : vector<2x1xf32> to vector<2x256xf32>
    %411 = arith.mulf %410, %397 : vector<2x256xf32>
    %412 = arith.addf %399, %401 : vector<2x256xf32>
    %413 = arith.addf %403, %405 : vector<2x256xf32>
    %414 = arith.addf %407, %409 : vector<2x256xf32>
    %415 = arith.addf %412, %413 : vector<2x256xf32>
    %416 = arith.addf %414, %411 : vector<2x256xf32>
    %417 = arith.addf %415, %416 : vector<2x256xf32>
    %cst_203 = arith.constant 0.000000e+00 : f32
    %418 = vector.broadcast %cst_203 : f32 to vector<2x48xf32>
    %419 = vector.extract_strided_slice %417 {offsets = [0, 0], sizes = [2, 208], strides = [1, 1]} : vector<2x256xf32> to vector<2x208xf32>
    %420 = tpu.concatenate %418, %419 in 1 : vector<2x48xf32>, vector<2x208xf32> -> vector<2x256xf32>
    %421 = vector.broadcast %79 : vector<2x1xf32> to vector<2x256xf32>
    %422 = arith.mulf %421, %317 : vector<2x256xf32>
    %423 = vector.broadcast %84 : vector<2x1xf32> to vector<2x256xf32>
    %424 = arith.mulf %423, %333 : vector<2x256xf32>
    %425 = vector.broadcast %89 : vector<2x1xf32> to vector<2x256xf32>
    %426 = arith.mulf %425, %349 : vector<2x256xf32>
    %427 = vector.broadcast %94 : vector<2x1xf32> to vector<2x256xf32>
    %428 = arith.mulf %427, %36 : vector<2x256xf32>
    %429 = vector.broadcast %99 : vector<2x1xf32> to vector<2x256xf32>
    %430 = arith.mulf %429, %365 : vector<2x256xf32>
    %431 = vector.broadcast %104 : vector<2x1xf32> to vector<2x256xf32>
    %432 = arith.mulf %431, %381 : vector<2x256xf32>
    %433 = vector.broadcast %109 : vector<2x1xf32> to vector<2x256xf32>
    %434 = arith.mulf %433, %397 : vector<2x256xf32>
    %435 = arith.addf %422, %424 : vector<2x256xf32>
    %436 = arith.addf %426, %428 : vector<2x256xf32>
    %437 = arith.addf %430, %432 : vector<2x256xf32>
    %438 = arith.addf %435, %436 : vector<2x256xf32>
    %439 = arith.addf %437, %434 : vector<2x256xf32>
    %440 = arith.addf %438, %439 : vector<2x256xf32>
    %cst_204 = arith.constant 0.000000e+00 : f32
    %441 = vector.broadcast %cst_204 : f32 to vector<2x32xf32>
    %442 = vector.extract_strided_slice %440 {offsets = [0, 0], sizes = [2, 224], strides = [1, 1]} : vector<2x256xf32> to vector<2x224xf32>
    %443 = tpu.concatenate %441, %442 in 1 : vector<2x32xf32>, vector<2x224xf32> -> vector<2x256xf32>
    %444 = vector.broadcast %114 : vector<2x1xf32> to vector<2x256xf32>
    %445 = arith.mulf %444, %317 : vector<2x256xf32>
    %446 = vector.broadcast %119 : vector<2x1xf32> to vector<2x256xf32>
    %447 = arith.mulf %446, %333 : vector<2x256xf32>
    %448 = vector.broadcast %124 : vector<2x1xf32> to vector<2x256xf32>
    %449 = arith.mulf %448, %349 : vector<2x256xf32>
    %450 = vector.broadcast %129 : vector<2x1xf32> to vector<2x256xf32>
    %451 = arith.mulf %450, %36 : vector<2x256xf32>
    %452 = vector.broadcast %134 : vector<2x1xf32> to vector<2x256xf32>
    %453 = arith.mulf %452, %365 : vector<2x256xf32>
    %454 = vector.broadcast %139 : vector<2x1xf32> to vector<2x256xf32>
    %455 = arith.mulf %454, %381 : vector<2x256xf32>
    %456 = vector.broadcast %144 : vector<2x1xf32> to vector<2x256xf32>
    %457 = arith.mulf %456, %397 : vector<2x256xf32>
    %458 = arith.addf %445, %447 : vector<2x256xf32>
    %459 = arith.addf %449, %451 : vector<2x256xf32>
    %460 = arith.addf %453, %455 : vector<2x256xf32>
    %461 = arith.addf %458, %459 : vector<2x256xf32>
    %462 = arith.addf %460, %457 : vector<2x256xf32>
    %463 = arith.addf %461, %462 : vector<2x256xf32>
    %cst_205 = arith.constant 0.000000e+00 : f32
    %464 = vector.broadcast %cst_205 : f32 to vector<2x16xf32>
    %465 = vector.extract_strided_slice %463 {offsets = [0, 0], sizes = [2, 240], strides = [1, 1]} : vector<2x256xf32> to vector<2x240xf32>
    %466 = tpu.concatenate %464, %465 in 1 : vector<2x16xf32>, vector<2x240xf32> -> vector<2x256xf32>
    %467 = vector.broadcast %149 : vector<2x1xf32> to vector<2x256xf32>
    %468 = arith.mulf %467, %317 : vector<2x256xf32>
    %469 = vector.broadcast %154 : vector<2x1xf32> to vector<2x256xf32>
    %470 = arith.mulf %469, %333 : vector<2x256xf32>
    %471 = vector.broadcast %159 : vector<2x1xf32> to vector<2x256xf32>
    %472 = arith.mulf %471, %349 : vector<2x256xf32>
    %473 = vector.broadcast %164 : vector<2x1xf32> to vector<2x256xf32>
    %474 = arith.mulf %473, %36 : vector<2x256xf32>
    %475 = vector.broadcast %169 : vector<2x1xf32> to vector<2x256xf32>
    %476 = arith.mulf %475, %365 : vector<2x256xf32>
    %477 = vector.broadcast %174 : vector<2x1xf32> to vector<2x256xf32>
    %478 = arith.mulf %477, %381 : vector<2x256xf32>
    %479 = vector.broadcast %179 : vector<2x1xf32> to vector<2x256xf32>
    %480 = arith.mulf %479, %397 : vector<2x256xf32>
    %481 = arith.addf %468, %470 : vector<2x256xf32>
    %482 = arith.addf %472, %474 : vector<2x256xf32>
    %483 = arith.addf %476, %478 : vector<2x256xf32>
    %484 = arith.addf %481, %482 : vector<2x256xf32>
    %485 = arith.addf %483, %480 : vector<2x256xf32>
    %486 = arith.addf %484, %485 : vector<2x256xf32>
    %487 = vector.broadcast %184 : vector<2x1xf32> to vector<2x256xf32>
    %488 = arith.mulf %487, %317 : vector<2x256xf32>
    %489 = vector.broadcast %189 : vector<2x1xf32> to vector<2x256xf32>
    %490 = arith.mulf %489, %333 : vector<2x256xf32>
    %491 = vector.broadcast %194 : vector<2x1xf32> to vector<2x256xf32>
    %492 = arith.mulf %491, %349 : vector<2x256xf32>
    %493 = vector.broadcast %199 : vector<2x1xf32> to vector<2x256xf32>
    %494 = arith.mulf %493, %36 : vector<2x256xf32>
    %495 = vector.broadcast %204 : vector<2x1xf32> to vector<2x256xf32>
    %496 = arith.mulf %495, %365 : vector<2x256xf32>
    %497 = vector.broadcast %209 : vector<2x1xf32> to vector<2x256xf32>
    %498 = arith.mulf %497, %381 : vector<2x256xf32>
    %499 = vector.broadcast %214 : vector<2x1xf32> to vector<2x256xf32>
    %500 = arith.mulf %499, %397 : vector<2x256xf32>
    %501 = arith.addf %488, %490 : vector<2x256xf32>
    %502 = arith.addf %492, %494 : vector<2x256xf32>
    %503 = arith.addf %496, %498 : vector<2x256xf32>
    %504 = arith.addf %501, %502 : vector<2x256xf32>
    %505 = arith.addf %503, %500 : vector<2x256xf32>
    %506 = arith.addf %504, %505 : vector<2x256xf32>
    %cst_206 = arith.constant 0.000000e+00 : f32
    %507 = vector.broadcast %cst_206 : f32 to vector<2x16xf32>
    %508 = vector.extract_strided_slice %506 {offsets = [0, 16], sizes = [2, 240], strides = [1, 1]} : vector<2x256xf32> to vector<2x240xf32>
    %509 = tpu.concatenate %508, %507 in 1 : vector<2x240xf32>, vector<2x16xf32> -> vector<2x256xf32>
    %510 = vector.broadcast %219 : vector<2x1xf32> to vector<2x256xf32>
    %511 = arith.mulf %510, %317 : vector<2x256xf32>
    %512 = vector.broadcast %224 : vector<2x1xf32> to vector<2x256xf32>
    %513 = arith.mulf %512, %333 : vector<2x256xf32>
    %514 = vector.broadcast %229 : vector<2x1xf32> to vector<2x256xf32>
    %515 = arith.mulf %514, %349 : vector<2x256xf32>
    %516 = vector.broadcast %234 : vector<2x1xf32> to vector<2x256xf32>
    %517 = arith.mulf %516, %36 : vector<2x256xf32>
    %518 = vector.broadcast %239 : vector<2x1xf32> to vector<2x256xf32>
    %519 = arith.mulf %518, %365 : vector<2x256xf32>
    %520 = vector.broadcast %244 : vector<2x1xf32> to vector<2x256xf32>
    %521 = arith.mulf %520, %381 : vector<2x256xf32>
    %522 = vector.broadcast %249 : vector<2x1xf32> to vector<2x256xf32>
    %523 = arith.mulf %522, %397 : vector<2x256xf32>
    %524 = arith.addf %511, %513 : vector<2x256xf32>
    %525 = arith.addf %515, %517 : vector<2x256xf32>
    %526 = arith.addf %519, %521 : vector<2x256xf32>
    %527 = arith.addf %524, %525 : vector<2x256xf32>
    %528 = arith.addf %526, %523 : vector<2x256xf32>
    %529 = arith.addf %527, %528 : vector<2x256xf32>
    %cst_207 = arith.constant 0.000000e+00 : f32
    %530 = vector.broadcast %cst_207 : f32 to vector<2x32xf32>
    %531 = vector.extract_strided_slice %529 {offsets = [0, 32], sizes = [2, 224], strides = [1, 1]} : vector<2x256xf32> to vector<2x224xf32>
    %532 = tpu.concatenate %531, %530 in 1 : vector<2x224xf32>, vector<2x32xf32> -> vector<2x256xf32>
    %533 = vector.broadcast %254 : vector<2x1xf32> to vector<2x256xf32>
    %534 = arith.mulf %533, %317 : vector<2x256xf32>
    %535 = vector.broadcast %259 : vector<2x1xf32> to vector<2x256xf32>
    %536 = arith.mulf %535, %333 : vector<2x256xf32>
    %537 = vector.broadcast %264 : vector<2x1xf32> to vector<2x256xf32>
    %538 = arith.mulf %537, %349 : vector<2x256xf32>
    %539 = vector.broadcast %269 : vector<2x1xf32> to vector<2x256xf32>
    %540 = arith.mulf %539, %36 : vector<2x256xf32>
    %541 = vector.broadcast %274 : vector<2x1xf32> to vector<2x256xf32>
    %542 = arith.mulf %541, %365 : vector<2x256xf32>
    %543 = vector.broadcast %279 : vector<2x1xf32> to vector<2x256xf32>
    %544 = arith.mulf %543, %381 : vector<2x256xf32>
    %545 = vector.broadcast %284 : vector<2x1xf32> to vector<2x256xf32>
    %546 = arith.mulf %545, %397 : vector<2x256xf32>
    %547 = arith.addf %534, %536 : vector<2x256xf32>
    %548 = arith.addf %538, %540 : vector<2x256xf32>
    %549 = arith.addf %542, %544 : vector<2x256xf32>
    %550 = arith.addf %547, %548 : vector<2x256xf32>
    %551 = arith.addf %549, %546 : vector<2x256xf32>
    %552 = arith.addf %550, %551 : vector<2x256xf32>
    %cst_208 = arith.constant 0.000000e+00 : f32
    %553 = vector.broadcast %cst_208 : f32 to vector<2x48xf32>
    %554 = vector.extract_strided_slice %552 {offsets = [0, 48], sizes = [2, 208], strides = [1, 1]} : vector<2x256xf32> to vector<2x208xf32>
    %555 = tpu.concatenate %554, %553 in 1 : vector<2x208xf32>, vector<2x48xf32> -> vector<2x256xf32>
    %556 = arith.addf %420, %443 : vector<2x256xf32>
    %557 = arith.addf %466, %486 : vector<2x256xf32>
    %558 = arith.addf %509, %532 : vector<2x256xf32>
    %559 = arith.addf %556, %557 : vector<2x256xf32>
    %560 = arith.addf %558, %555 : vector<2x256xf32>
    %561 = arith.addf %559, %560 : vector<2x256xf32>
    %562 = vector.extract_strided_slice %561 {offsets = [0, 0], sizes = [1, 256], strides = [1, 1]} : vector<2x256xf32> to vector<1x256xf32>
    %563 = vector.extract_strided_slice %561 {offsets = [1, 0], sizes = [1, 256], strides = [1, 1]} : vector<2x256xf32> to vector<1x256xf32>
    %564 = arith.addf %562, %563 : vector<1x256xf32>
    %565 = arith.negf %564 : vector<1x256xf32>
    %566 = math.exp %565 : vector<1x256xf32>
    %cst_209 = arith.constant 1.000000e+00 : f32
    %567 = vector.broadcast %cst_209 : f32 to vector<1x256xf32>
    %568 = arith.addf %567, %566 : vector<1x256xf32>
    %569 = arith.divf %567, %568 : vector<1x256xf32>
    %cst_210 = arith.constant 1.000000e+00 : f32
    %570 = vector.broadcast %cst_210 : f32 to vector<1x256xf32>
    %571 = arith.addf %570, %569 : vector<1x256xf32>
    %572 = arith.mulf %31, %31 : vector<1x8x256xf32>
    %573 = vector.shape_cast %571 : vector<1x256xf32> to vector<1x1x256xf32>
    %574 = vector.broadcast %573 : vector<1x1x256xf32> to vector<1x8x256xf32>
    %575 = arith.mulf %572, %574 : vector<1x8x256xf32>
    %c0_211 = arith.constant 0 : index
    %c0_212 = arith.constant 0 : index
    %c0_213 = arith.constant 0 : index
    %576 = vector.load %arg7[%c0_211, %c0_212, %c0_213] : memref<1x8x256xf32, #tpu.memory_space<vmem>>, vector<1x8x256xf32>
    tpu.vector_store %arg7[%c0_211, %c0_212, %c0_213], %575 {strides = array<i32>} : memref<1x8x256xf32, #tpu.memory_space<vmem>>, vector<1x8x256xf32>,
    return
  }
  func.func @transform_0(%arg0: i32) -> (i32, i32, i32) {
    %c0_i32 = arith.constant 0 : i32
    %c0_i32_0 = arith.constant 0 : i32
    %c0_i32_1 = arith.constant 0 : i32
    return %arg0, %c0_i32, %c0_i32_0 : i32, i32, i32
  }
  func.func @transform_1(%arg0: i32) -> (i32, i32) {
    %c0_i32 = arith.constant 0 : i32
    %c0_i32_0 = arith.constant 0 : i32
    %c0_i32_1 = arith.constant 0 : i32
    return %c0_i32, %c0_i32_0 : i32, i32
  }
  func.func @transform_2(%arg0: i32) -> (i32, i32) {
    %c0_i32 = arith.constant 0 : i32
    %c0_i32_0 = arith.constant 0 : i32
    %c0_i32_1 = arith.constant 0 : i32
    return %c0_i32, %c0_i32_0 : i32, i32
  }
  func.func @transform_3(%arg0: i32) -> (i32, i32) {
    %c0_i32 = arith.constant 0 : i32
    %c0_i32_0 = arith.constant 0 : i32
    %c0_i32_1 = arith.constant 0 : i32
    return %c0_i32, %c0_i32_0 : i32, i32
  }
  func.func @transform_4(%arg0: i32) -> (i32, i32) {
    %c0_i32 = arith.constant 0 : i32
    %c0_i32_0 = arith.constant 0 : i32
    %c0_i32_1 = arith.constant 0 : i32
    return %c0_i32, %c0_i32_0 : i32, i32
  }
  func.func @transform_5(%arg0: i32) -> (i32, i32) {
    %c0_i32 = arith.constant 0 : i32
    %c0_i32_0 = arith.constant 0 : i32
    %c0_i32_1 = arith.constant 0 : i32
    return %c0_i32, %c0_i32_0 : i32, i32
  }
  func.func @transform_6(%arg0: i32) -> (i32, i32, i32) {
    %c0_i32 = arith.constant 0 : i32
    %c0_i32_0 = arith.constant 0 : i32
    %c0_i32_1 = arith.constant 0 : i32
    return %arg0, %c0_i32, %c0_i32_0 : i32, i32, i32
  }
}

</mosaic_0001>

<llo_original>
// kernel: tpu_custom_call.1
$region0: #{tpu_custom_call.1}
  #allocation0 [shape = 'u32[]', space=smem, size = 0x4, offset = 0x4, fixed_abs, tag = 'smem constant byte address 0x4 - core index']
  #allocation1 [shape = 'u32[144,128]{1,0:T(1,128)}', space=vmem, size = 0x12000, scoped, tag = 'internal scratch']
  %s0 = inlined_call_operand.hbm [shape: f32[2,8,256], index: 0, kind: input, shape index: {}]
  %s1 = inlined_call_operand.vmem [shape: f32[8,4], index: 1, kind: input, shape index: {}]
  %s2 = inlined_call_operand.vmem [shape: f32[1,4], index: 2, kind: input, shape index: {}]
  %s3 = inlined_call_operand.vmem [shape: f32[4,8], index: 3, kind: input, shape index: {}]
  %s4 = inlined_call_operand.vmem [shape: f32[1,8], index: 4, kind: input, shape index: {}]
  %s5 = inlined_call_operand.vmem [shape: f32[2,49], index: 5, kind: input, shape index: {}]
  %s6 = inlined_call_operand.hbm [shape: f32[2,8,256], index: 6, kind: output, shape index: {}]
  %s7 = sld [smem:[#allocation0]]
  $region65: #{tpu_custom_call.1} parent=0
    _
  %s9 = ssub.s32 1, %s7
  %s10 = scalar_select 0, %s9, %s7
  $region1: #{tpu_custom_call.1} parent=0
    #allocation2 [shape = 'u8[16384]{0}', space=vmem, size = 0x4000, scoped, tag = 'input window, operand 0']
    #allocation3 [shape = 's32[2]{0}', space=sflag, size = 0x8, scoped, tag = 'scoped memory for tpu_custom_call.1']
    #allocation4 [shape = 's32[2]{0}', space=sflag, size = 0x8, scoped, tag = 'scoped memory for tpu_custom_call.1']
    #allocation5 [shape = 's32[2]{0}', space=sflag, size = 0x8, scoped, tag = 'scoped memory for tpu_custom_call.1']
    #allocation6 [shape = 'u8[1024]{0}', space=smem, size = 0x400, scoped, tag = 'input window, operand 5, single buffered']
    #allocation7 [shape = 'u8[16384]{0}', space=vmem, size = 0x4000, scoped, tag = 'output window, operand 0']
    %11 = vsyncpa [#allocation3], 0
    %s12 = scalar_lea.sflag [#allocation3], 1
    %13 = vsyncpa %s12, 0
    %14 = vsyncpa [#allocation5], 0
    %15 = vsyncpa [#allocation4], 0
    %s16 = scalar_lea.sflag [#allocation4], 1
    %17 = vsyncpa %s16, 0
    loop: start=0, step=1, limit=4
    $region2: #{tpu_custom_call.1} parent=1 // loop_pre_header
      _
    $region3: #{tpu_custom_call.1} parent=1 // loop_header
      %s19 = sphi 0, %s23
      %p20 = scmp.ge.s32.totalorder %s19, 4
      %s29 = sphi 0, %s31
      %s32 = sphi 0, %s29
      %s33 = sphi 0, %s32
      %s49 = sphi 0, %s33
      %s53 = sphi 0, %s53
      %s55 = sphi 0, %s53
      %s56 = sphi 0, %s55
      %s70 = sphi 0, %s56
      %s74 = sphi 0, %s74
      %s76 = sphi 0, %s74
      %s77 = sphi 0, %s76
      %s91 = sphi 0, %s77
      %s95 = sphi 0, %s95
      %s97 = sphi 0, %s95
      %s98 = sphi 0, %s97
      %s112 = sphi 0, %s98
      %s116 = sphi 0, %s116
      %s118 = sphi 0, %s116
      %s119 = sphi 0, %s118
      %s133 = sphi 0, %s119
      %s137 = sphi 0, %s137
      %s139 = sphi 0, %s137
      %s140 = sphi 0, %s139
      %s154 = sphi 0, %s140
      %s160 = sphi 0, %s162
      %s163 = sphi 0, %s160
      %s164 = sphi 0, %s163
      %s180 = sphi 0, %s164
    $region4: #{tpu_custom_call.1} parent=1 // loop_header_branch
      %22 = sbr.rel (%p20) target = $region8
    $region5: #{tpu_custom_call.1} parent=1 // loop_body
      %s24 = ssub.s32 %s19, 1
      %s25 = ssub.s32 %s19, 2
      %s26 = sadd.s32 %s19, 1
      %s27 = ssub.s32 %s19, %s26
      %p28 = scmp.eq.s32.totalorder %s27, 0
      %s30 = sadd.s32 %s29, 1
      %s31 = scalar_select %p28, %s29, %s30
      %p34 = pneg %p28
      %p35 = scmp.eq.s32.totalorder %s19, 1
      %p36 = por %p34, %p35
      %p37 = scmp.ne.s32.totalorder %s29, %s32
      %p38 = scmp.eq.s32.totalorder %s19, 0
      %p39 = por %p37, %p38
      %p40 = scmp.ne.s32.totalorder %s29, %s32
      %p41 = scmp.eq.s32.totalorder %s24, 1
      %p42 = por %p40, %p41
      %p43 = scmp.ne.s32.totalorder %s32, %s33
      %p44 = scmp.eq.s32.totalorder %s24, 0
      %p45 = por %p43, %p44
      %p46 = scmp.ne.s32.totalorder %s32, %s33
      %p47 = scmp.eq.s32.totalorder %s25, 1
      %p48 = por %p46, %p47
      %p50 = scmp.ne.s32.totalorder %s33, %s49
      %p51 = scmp.eq.s32.totalorder %s25, 0
      %p52 = por %p50, %p51
      %s54 = sadd.s32 %s53, 1
      %p57 = scmp.eq.s32.totalorder %s19, 1
      %p58 = scmp.ne.s32.totalorder %s53, %s55
      %p59 = scmp.eq.s32.totalorder %s19, 0
      %p60 = por %p58, %p59
      %p61 = scmp.ne.s32.totalorder %s53, %s55
      %p62 = scmp.eq.s32.totalorder %s24, 1
      %p63 = por %p61, %p62
      %p64 = scmp.ne.s32.totalorder %s55, %s56
      %p65 = scmp.eq.s32.totalorder %s24, 0
      %p66 = por %p64, %p65
      %p67 = scmp.ne.s32.totalorder %s55, %s56
      %p68 = scmp.eq.s32.totalorder %s25, 1
      %p69 = por %p67, %p68
      %p71 = scmp.ne.s32.totalorder %s56, %s70
      %p72 = scmp.eq.s32.totalorder %s25, 0
      %p73 = por %p71, %p72
      %s75 = sadd.s32 %s74, 1
      %p78 = scmp.eq.s32.totalorder %s19, 1
      %p79 = scmp.ne.s32.totalorder %s74, %s76
      %p80 = scmp.eq.s32.totalorder %s19, 0
      %p81 = por %p79, %p80
      %p82 = scmp.ne.s32.totalorder %s74, %s76
      %p83 = scmp.eq.s32.totalorder %s24, 1
      %p84 = por %p82, %p83
      %p85 = scmp.ne.s32.totalorder %s76, %s77
      %p86 = scmp.eq.s32.totalorder %s24, 0
      %p87 = por %p85, %p86
      %p88 = scmp.ne.s32.totalorder %s76, %s77
      %p89 = scmp.eq.s32.totalorder %s25, 1
      %p90 = por %p88, %p89
      %p92 = scmp.ne.s32.totalorder %s77, %s91
      %p93 = scmp.eq.s32.totalorder %s25, 0
      %p94 = por %p92, %p93
      %s96 = sadd.s32 %s95, 1
      %p99 = scmp.eq.s32.totalorder %s19, 1
      %p100 = scmp.ne.s32.totalorder %s95, %s97
      %p101 = scmp.eq.s32.totalorder %s19, 0
      %p102 = por %p100, %p101
      %p103 = scmp.ne.s32.totalorder %s95, %s97
      %p104 = scmp.eq.s32.totalorder %s24, 1
      %p105 = por %p103, %p104
      %p106 = scmp.ne.s32.totalorder %s97, %s98
      %p107 = scmp.eq.s32.totalorder %s24, 0
      %p108 = por %p106, %p107
      %p109 = scmp.ne.s32.totalorder %s97, %s98
      %p110 = scmp.eq.s32.totalorder %s25, 1
      %p111 = por %p109, %p110
      %p113 = scmp.ne.s32.totalorder %s98, %s112
      %p114 = scmp.eq.s32.totalorder %s25, 0
      %p115 = por %p113, %p114
      %s117 = sadd.s32 %s116, 1
      %p120 = scmp.eq.s32.totalorder %s19, 1
      %p121 = scmp.ne.s32.totalorder %s116, %s118
      %p122 = scmp.eq.s32.totalorder %s19, 0
      %p123 = por %p121, %p122
      %p124 = scmp.ne.s32.totalorder %s116, %s118
      %p125 = scmp.eq.s32.totalorder %s24, 1
      %p126 = por %p124, %p125
      %p127 = scmp.ne.s32.totalorder %s118, %s119
      %p128 = scmp.eq.s32.totalorder %s24, 0
      %p129 = por %p127, %p128
      %p130 = scmp.ne.s32.totalorder %s118, %s119
      %p131 = scmp.eq.s32.totalorder %s25, 1
      %p132 = por %p130, %p131
      %p134 = scmp.ne.s32.totalorder %s119, %s133
      %p135 = scmp.eq.s32.totalorder %s25, 0
      %p136 = por %p134, %p135
      %s138 = sadd.s32 %s137, 1
      %p141 = scmp.eq.s32.totalorder %s19, 1
      %p142 = scmp.ne.s32.totalorder %s137, %s139
      %p143 = scmp.eq.s32.totalorder %s19, 0
      %p144 = por %p142, %p143
      %p145 = scmp.ne.s32.totalorder %s137, %s139
      %p146 = scmp.eq.s32.totalorder %s24, 1
      %p147 = por %p145, %p146
      %p148 = scmp.ne.s32.totalorder %s139, %s140
      %p149 = scmp.eq.s32.totalorder %s24, 0
      %p150 = por %p148, %p149
      %p151 = scmp.ne.s32.totalorder %s139, %s140
      %p152 = scmp.eq.s32.totalorder %s25, 1
      %p153 = por %p151, %p152
      %p155 = scmp.ne.s32.totalorder %s140, %s154
      %p156 = scmp.eq.s32.totalorder %s25, 0
      %p157 = por %p155, %p156
      %s158 = ssub.s32 %s19, %s26
      %p159 = scmp.eq.s32.totalorder %s158, 0
      %s161 = sadd.s32 %s160, 1
      %s162 = scalar_select %p159, %s160, %s161
      %p165 = pneg %p159
      %p166 = scmp.eq.s32.totalorder %s19, 1
      %p167 = por %p165, %p166
      %p168 = scmp.ne.s32.totalorder %s160, %s163
      %p169 = scmp.eq.s32.totalorder %s19, 0
      %p170 = por %p168, %p169
      %p171 = scmp.ne.s32.totalorder %s160, %s163
      %p172 = scmp.eq.s32.totalorder %s24, 1
      %p173 = por %p171, %p172
      %p174 = scmp.ne.s32.totalorder %s163, %s164
      %p175 = scmp.eq.s32.totalorder %s24, 0
      %p176 = por %p174, %p175
      %p177 = scmp.ne.s32.totalorder %s163, %s164
      %p178 = scmp.eq.s32.totalorder %s25, 1
      %p179 = por %p177, %p178
      %p181 = scmp.ne.s32.totalorder %s164, %s180
      %p182 = scmp.eq.s32.totalorder %s25, 0
      %p183 = por %p181, %p182
      %p184 = scmp.le.s32.totalorder 1, %s19
      %p185 = scmp.lt.s32.totalorder %s19, 3
      %p186 = pnand %p184, %p185
      %p187 = pneg %p186
      // Predicated region
      $region9: #{tpu_custom_call.1} parent=5 // pred_check
        _
      $region10: #{tpu_custom_call.1} parent=5 // pred_check_branch
        %189 = sbr.rel (%p186) target = $region12
      $region11: #{tpu_custom_call.1} parent=5 // pred_region
        %s190 = ssub.s32 %s19, 1
        // Predicated region
        $region13: #{tpu_custom_call.1} parent=11 // pred_check
          %p191 = pneg %p66
        $region14: #{tpu_custom_call.1} parent=11 // pred_check_branch
          %193 = sbr.rel (%p191) target = $region16
        $region15: #{tpu_custom_call.1} parent=11 // pred_region
          _
        $region16: #{tpu_custom_call.1} parent=11 // pred_fallthru
          _
        // Predicated region
        $region17: #{tpu_custom_call.1} parent=11 // pred_check
          %p194 = pneg %p87
        $region18: #{tpu_custom_call.1} parent=11 // pred_check_branch
          %196 = sbr.rel (%p194) target = $region20
        $region19: #{tpu_custom_call.1} parent=11 // pred_region
          _
        $region20: #{tpu_custom_call.1} parent=11 // pred_fallthru
          _
        // Predicated region
        $region21: #{tpu_custom_call.1} parent=11 // pred_check
          %p197 = pneg %p108
        $region22: #{tpu_custom_call.1} parent=11 // pred_check_branch
          %199 = sbr.rel (%p197) target = $region24
        $region23: #{tpu_custom_call.1} parent=11 // pred_region
          _
        $region24: #{tpu_custom_call.1} parent=11 // pred_fallthru
          _
        // Predicated region
        $region25: #{tpu_custom_call.1} parent=11 // pred_check
          %p200 = pneg %p129
        $region26: #{tpu_custom_call.1} parent=11 // pred_check_branch
          %202 = sbr.rel (%p200) target = $region28
        $region27: #{tpu_custom_call.1} parent=11 // pred_region
          _
        $region28: #{tpu_custom_call.1} parent=11 // pred_fallthru
          _
        // Predicated region
        $region29: #{tpu_custom_call.1} parent=11 // pred_check
          %p203 = pneg %p150
        $region30: #{tpu_custom_call.1} parent=11 // pred_check_branch
          %205 = sbr.rel (%p203) target = $region32
        $region31: #{tpu_custom_call.1} parent=11 // pred_region
          %s207 = ssub.s32 32, 32
          %208 = vsyncadd [#allocation5], %s207
          %s210 = sshll.u32 %s5, 4
          %s211 = int_to_ptr.vmem [resolvable:$true] %s210
          %213 = dma.vmem_to_smem %s211, 32, [#allocation6], [#allocation5]
        $region32: #{tpu_custom_call.1} parent=11 // pred_fallthru
          _
      $region12: #{tpu_custom_call.1} parent=5 // pred_fallthru
        _
      %p214 = scmp.lt.s32.totalorder %s19, 2
      // Predicated region
      $region33: #{tpu_custom_call.1} parent=5 // pred_check
        %p215 = pneg %p214
      $region34: #{tpu_custom_call.1} parent=5 // pred_check_branch
        %217 = sbr.rel (%p215) target = $region36
      $region35: #{tpu_custom_call.1} parent=5 // pred_region
        // Predicated region
        $region37: #{tpu_custom_call.1} parent=35 // pred_check
          %p218 = pneg %p39
        $region38: #{tpu_custom_call.1} parent=35 // pred_check_branch
          %220 = sbr.rel (%p218) target = $region40
        $region39: #{tpu_custom_call.1} parent=35 // pred_region
          %s221 = sand.u32 %s29, 1
          %s222 = scalar_lea.sflag [#allocation3], %s221
          %s223 = sand.u32 %s29, 1
          %s224 = smul.addr %s223, 16
          %s225 = scalar_lea.vmem [#allocation2], %s224
          %s227 = ssub.s32 256, 256
          %228 = vsyncadd %s222, %s227
          %s229 = smul.addr %s19, 2
          %s230 = smul.addr %s229, 128
          %s231 = scalar_lea.hbm %s0, %s230
          %s233 = sshll.u32 %s225, 4
          %s234 = int_to_ptr.vmem [resolvable:$true] %s233
          %236 = dma.hbm_to_vmem [thread:$0]  %s231, 256, %s234, %s222
        $region40: #{tpu_custom_call.1} parent=35 // pred_fallthru
          _
      $region36: #{tpu_custom_call.1} parent=5 // pred_fallthru
        _
      %p237 = scmp.le.s32.totalorder 1, %s19
      %p238 = scmp.lt.s32.totalorder %s19, 3
      %p239 = pnand %p237, %p238
      %p240 = pneg %p239
      // Predicated region
      $region41: #{tpu_custom_call.1} parent=5 // pred_check
        _
      $region42: #{tpu_custom_call.1} parent=5 // pred_check_branch
        %242 = sbr.rel (%p239) target = $region44
      $region43: #{tpu_custom_call.1} parent=5 // pred_region
        %s243 = ssub.s32 %s19, 1
        %s244 = sand.u32 %s32, 1
        %s245 = scalar_lea.sflag [#allocation3], %s244
        %s246 = sand.u32 %s32, 1
        %s247 = smul.addr %s246, 16
        %s248 = scalar_lea.vmem [#allocation2], %s247
        // Predicated region
        $region45: #{tpu_custom_call.1} parent=43 // pred_check
          %p249 = pneg %p45
        $region46: #{tpu_custom_call.1} parent=43 // pred_check_branch
          %251 = sbr.rel (%p249) target = $region48
        $region47: #{tpu_custom_call.1} parent=43 // pred_region
          %252 = dma.done %s245, 256
        $region48: #{tpu_custom_call.1} parent=43 // pred_fallthru
          _
        // Predicated region
        $region49: #{tpu_custom_call.1} parent=43 // pred_check
          %p253 = pneg %p150
        $region50: #{tpu_custom_call.1} parent=43 // pred_check_branch
          %255 = sbr.rel (%p253) target = $region52
        $region51: #{tpu_custom_call.1} parent=43 // pred_region
          %256 = dma.done [#allocation5], 32
        $region52: #{tpu_custom_call.1} parent=43 // pred_fallthru
          _
        %257 = sfence
        %s258 = sand.u32 %s32, 1
        %s259 = scalar_lea.sflag [#allocation3], %s258
        %s260 = sand.u32 %s32, 1
        %s261 = smul.addr %s260, 16
        %s262 = scalar_lea.vmem [#allocation2], %s261
        %p263 = pneg %p45
        %p264 = pneg %p42
        %p265 = pneg %p66
        %p266 = pneg %p63
        %p267 = pneg %p87
        %p268 = pneg %p84
        %p269 = pneg %p108
        %p270 = pneg %p105
        %p271 = pneg %p129
        %p272 = pneg %p126
        %p273 = pneg %p150
        %p274 = pneg %p147
        %p275 = pneg %p176
        %p276 = pneg %p173
        %s277 = sand.u32 %s163, 1
        %s278 = scalar_lea.sflag [#allocation4], %s277
        %s279 = sand.u32 %s163, 1
        %s280 = smul.addr %s279, 16
        %s281 = scalar_lea.vmem [#allocation7], %s280
        %v282 = vld [vmem:[%s248] sm:$0xff]
        %v283 = vld [vmem:[%s248 + $0x8] sm:$0xff]
        %v284 = vmax.f32 %v282, %v283
        %285 = vmax.xlane.f32.xlu0 %v284
        %v286 = vpop.xlane.xlu0 %285
        %v287 = vadd.f32 %v282, %v283
        %288 = vadd.xlane.f32.xlu0 %v287
        %v289 = vpop.xlane.xlu0 %288
        %v290 = vmul.f32 %v289, 0.00390625
        %v292 = vlaneseq
        %v293 = vand.u32 %v292, 127
        %v294 = vlaneseq
        %v295 = vshrl.u32 %v294, 7
        %v296 = vsub.s32 %v293, %v295
        %v297 = vrot.slane %v286, %v296
        %v300 = vlaneseq
        %v301 = vshrl.u32 %v300, 7
        %v302 = vsub.s32 %v293, %v301
        %v303 = vrot.slane %v290, %v302
        %vm305 = vcmask 1040384
        %v306 = vsel %vm305, %v297, %v303
        %v307 = vld [vmem:[%s1] sm:$0xff]
        %v308 = vld [vmem:[%s2] sm:$0x1]
        %v310 = vlaneseq
        %v311 = vshrl.u32 %v310, 7
        %v312 = vsub.s32 0, %v311
        %v313 = vrot.slane %v308, %v312
        %vm315 = vcmask 64512
        %v317 = vsel %vm315, %v306, 0
        %319 = vmatprep.subr.mxu0 0.0
        %320 = vmatpush1.msra.mxu0 %v307
        %321 = vmatprep.subr.mxu0 0.0
        %322 = vmatpush1.msra.mxu0 0.0
        %323 = vmatprep.subr.mxu0 0.0
        %324 = vmatpush1.msra.mxu0 0.0
        %325 = vmatprep.subr.mxu0 0.0
        %326 = vmatpush1.msra.mxu0 0.0
        %327 = vmatprep.subr.mxu0 0.0
        %328 = vmatpush1.msra.mxu0 0.0
        %329 = vmatprep.subr.mxu0 0.0
        %330 = vmatpush1.msra.mxu0 0.0
        %331 = vmatprep.subr.mxu0 0.0
        %332 = vmatpush1.msra.mxu0 0.0
        %333 = vmatprep.subr.mxu0 0.0
        %334 = vmatpush1.msra.mxu0 0.0
        %335 = vmatprep.subr.mxu0 0.0
        %336 = vmatpush1.msra.mxu0 0.0
        %337 = vmatprep.subr.mxu0 0.0
        %338 = vmatpush1.msra.mxu0 0.0
        %339 = vmatprep.subr.mxu0 0.0
        %340 = vmatpush1.msra.mxu0 0.0
        %341 = vmatprep.subr.mxu0 0.0
        %342 = vmatpush1.msra.mxu0 0.0
        %343 = vmatprep.subr.mxu0 0.0
        %344 = vmatpush1.msra.mxu0 0.0
        %345 = vmatprep.subr.mxu0 0.0
        %346 = vmatpush1.msra.mxu0 0.0
        %347 = vmatprep.subr.mxu0 0.0
        %348 = vmatpush1.msra.mxu0 0.0
        %349 = vmatprep.subr.mxu0 0.0
        %350 = vmatpush1.msra.mxu0 0.0
        %351 = vmatprep.subr.mxu0 0.0
        %352 = vmatpush1.msra.mxu0 0.0
        %353 = vmatprep.subr.mxu0 0.0
        %354 = vmatpush1.msra.mxu0 0.0
        %355 = vmatprep.subr.mxu0 0.0
        %356 = vmatpush1.msra.mxu0 0.0
        %357 = vmatprep.subr.mxu0 0.0
        %358 = vmatpush1.msra.mxu0 0.0
        %359 = vmatprep.subr.mxu0 0.0
        %360 = vmatpush1.msra.mxu0 0.0
        %361 = vmatprep.subr.mxu0 0.0
        %362 = vmatpush1.msra.mxu0 0.0
        %363 = vmatprep.subr.mxu0 0.0
        %364 = vmatpush1.msra.mxu0 0.0
        %365 = vmatprep.subr.mxu0 0.0
        %366 = vmatpush1.msra.mxu0 0.0
        %367 = vmatprep.subr.mxu0 0.0
        %368 = vmatpush1.msra.mxu0 0.0
        %369 = vmatprep.subr.mxu0 0.0
        %370 = vmatpush1.msra.mxu0 0.0
        %371 = vmatprep.subr.mxu0 0.0
        %372 = vmatpush1.msra.mxu0 0.0
        %373 = vmatprep.subr.mxu0 0.0
        %374 = vmatpush1.msra.mxu0 0.0
        %375 = vmatprep.subr.mxu0 0.0
        %376 = vmatpush1.msra.mxu0 0.0
        %377 = vmatprep.subr.mxu0 0.0
        %378 = vmatpush1.msra.mxu0 0.0
        %379 = vmatprep.subr.mxu0 0.0
        %380 = vmatpush1.msra.mxu0 0.0
        %381 = vmatprep.subr.mxu0 0.0
        %382 = vmatpush1.msra.mxu0 0.0
        %383 = vmatprep.mubr.f32.mxu0 0.0
        %384 = vmatmul.mubr.f32.gmra.mrb[0].mxu0 %v317
        %v385 = vpop.f32.mrb[0].mxu0
        %v386 = vadd.f32 %v313, %v385
        %v387 = vpop.f32.mrb[0].mxu0
        %388 = vdwg.mxu0
        %v389 = vmax.f32 %v386, 0.0
        %v390 = vld [vmem:[%s3] sm:$0xf]
        %v391 = vld [vmem:[%s4] sm:$0x1]
        %v393 = vlaneseq
        %v394 = vshrl.u32 %v393, 7
        %v395 = vsub.s32 0, %v394
        %v396 = vrot.slane %v391, %v395
        %vm398 = vcmask 31744
        %v400 = vsel %vm398, %v389, 0
        %vm402 = vcmask 1043456
        %v404 = vsel %vm402, %v390, 0
        %406 = vmatprep.subr.mxu0 0.0
        %407 = vmatpush1.msra.mxu0 %v404
        %408 = vmatprep.subr.mxu0 0.0
        %409 = vmatpush1.msra.mxu0 0.0
        %410 = vmatprep.subr.mxu0 0.0
        %411 = vmatpush1.msra.mxu0 0.0
        %412 = vmatprep.subr.mxu0 0.0
        %413 = vmatpush1.msra.mxu0 0.0
        %414 = vmatprep.subr.mxu0 0.0
        %415 = vmatpush1.msra.mxu0 0.0
        %416 = vmatprep.subr.mxu0 0.0
        %417 = vmatpush1.msra.mxu0 0.0
        %418 = vmatprep.subr.mxu0 0.0
        %419 = vmatpush1.msra.mxu0 0.0
        %420 = vmatprep.subr.mxu0 0.0
        %421 = vmatpush1.msra.mxu0 0.0
        %422 = vmatprep.subr.mxu0 0.0
        %423 = vmatpush1.msra.mxu0 0.0
        %424 = vmatprep.subr.mxu0 0.0
        %425 = vmatpush1.msra.mxu0 0.0
        %426 = vmatprep.subr.mxu0 0.0
        %427 = vmatpush1.msra.mxu0 0.0
        %428 = vmatprep.subr.mxu0 0.0
        %429 = vmatpush1.msra.mxu0 0.0
        %430 = vmatprep.subr.mxu0 0.0
        %431 = vmatpush1.msra.mxu0 0.0
        %432 = vmatprep.subr.mxu0 0.0
        %433 = vmatpush1.msra.mxu0 0.0
        %434 = vmatprep.subr.mxu0 0.0
        %435 = vmatpush1.msra.mxu0 0.0
        %436 = vmatprep.subr.mxu0 0.0
        %437 = vmatpush1.msra.mxu0 0.0
        %438 = vmatprep.subr.mxu0 0.0
        %439 = vmatpush1.msra.mxu0 0.0
        %440 = vmatprep.subr.mxu0 0.0
        %441 = vmatpush1.msra.mxu0 0.0
        %442 = vmatprep.subr.mxu0 0.0
        %443 = vmatpush1.msra.mxu0 0.0
        %444 = vmatprep.subr.mxu0 0.0
        %445 = vmatpush1.msra.mxu0 0.0
        %446 = vmatprep.subr.mxu0 0.0
        %447 = vmatpush1.msra.mxu0 0.0
        %448 = vmatprep.subr.mxu0 0.0
        %449 = vmatpush1.msra.mxu0 0.0
        %450 = vmatprep.subr.mxu0 0.0
        %451 = vmatpush1.msra.mxu0 0.0
        %452 = vmatprep.subr.mxu0 0.0
        %453 = vmatpush1.msra.mxu0 0.0
        %454 = vmatprep.subr.mxu0 0.0
        %455 = vmatpush1.msra.mxu0 0.0
        %456 = vmatprep.subr.mxu0 0.0
        %457 = vmatpush1.msra.mxu0 0.0
        %458 = vmatprep.subr.mxu0 0.0
        %459 = vmatpush1.msra.mxu0 0.0
        %460 = vmatprep.subr.mxu0 0.0
        %461 = vmatpush1.msra.mxu0 0.0
        %462 = vmatprep.subr.mxu0 0.0
        %463 = vmatpush1.msra.mxu0 0.0
        %464 = vmatprep.subr.mxu0 0.0
        %465 = vmatpush1.msra.mxu0 0.0
        %466 = vmatprep.subr.mxu0 0.0
        %467 = vmatpush1.msra.mxu0 0.0
        %468 = vmatprep.subr.mxu0 0.0
        %469 = vmatpush1.msra.mxu0 0.0
        %470 = vmatprep.mubr.f32.mxu0 0.0
        %471 = vmatmul.mubr.f32.gmra.mrb[0].mxu0 %v400
        %v472 = vpop.f32.mrb[0].mxu0
        %v473 = vadd.f32 %v396, %v472
        %v474 = vpop.f32.mrb[0].mxu0
        %475 = vdwg.mxu0
        %v477 = vrot.slane %v473, 1
        %v479 = vadd.f32 %v473, %v477
        %v480 = vxor.u32 %v479, 2147483648
        %v481 = vmul.f32 %v480, 1.442695
        %v482 = vpow.pop %v481
        %v483 = vadd.f32 %v482, 1.0
        %v484 = vrcp.pop %v483
        %v485 = vmul.f32 1.0, %v484
        %v486 = vadd.f32 %v485, 1.0
        %v487 = vmul.f32 %v282, %v282
        %v488 = vmul.f32 %v283, %v283
        %v489 = vlaneseq
        %v490 = vshrl.u32 %v489, 7
        %v491 = vsub.s32 0, %v490
        %v492 = vrot.slane %v486, %v491
        %494 = vbcast.lane.b32.xlu0 %v492, 256
        %v495 = vpop.permute.xlu0 %494
        %v496 = vmul.f32 %v487, %v495
        %v497 = vmul.f32 %v488, %v495
        %v498 = vrot.slane %v496, 4
        %v499 = vmax.f32 %v496, %v498
        %v500 = vrot.slane %v499, 2
        %v501 = vmax.f32 %v499, %v500
        %v502 = vrot.slane %v501, 1
        %v503 = vmax.f32 %v501, %v502
        %v504 = vrot.slane %v497, 4
        %v505 = vmax.f32 %v497, %v504
        %v506 = vrot.slane %v505, 2
        %v507 = vmax.f32 %v505, %v506
        %v508 = vrot.slane %v507, 1
        %v509 = vmax.f32 %v507, %v508
        %v510 = vrot.slane %v496, 4
        %v511 = vadd.f32 %v496, %v510
        %v512 = vrot.slane %v511, 2
        %v513 = vadd.f32 %v511, %v512
        %v514 = vrot.slane %v513, 1
        %v515 = vadd.f32 %v513, %v514
        %v516 = vrot.slane %v497, 4
        %v517 = vadd.f32 %v497, %v516
        %v518 = vrot.slane %v517, 2
        %v519 = vadd.f32 %v517, %v518
        %v520 = vrot.slane %v519, 1
        %v521 = vadd.f32 %v519, %v520
        %v522 = vmul.f32 %v515, 0.125
        %v523 = vmul.f32 %v521, 0.125
        %v524 = vsel %vm305, %v503, %v522
        %v525 = vsel %vm305, %v509, %v523
        %v526 = vlaneseq
        %v527 = vshrl.u32 %v526, 7
        %vm528 = vcmp.lt.s32.totalorder %v527, 1
        %s529 = sld [smem:[#allocation6]]
        %s530 = sld [smem:[#allocation6 + $0x80]]
        %v531 = vstv %s529
        %v532 = vstv %s530
        %v533 = vsel %vm528, %v531, %v532
        %s534 = sld [smem:[#allocation6 + $0x1]]
        %s535 = sld [smem:[#allocation6 + $0x81]]
        %v536 = vstv %s534
        %v537 = vstv %s535
        %v538 = vsel %vm528, %v536, %v537
        %s539 = sld [smem:[#allocation6 + $0x2]]
        %s540 = sld [smem:[#allocation6 + $0x82]]
        %v541 = vstv %s539
        %v542 = vstv %s540
        %v543 = vsel %vm528, %v541, %v542
        %s544 = sld [smem:[#allocation6 + $0x3]]
        %s545 = sld [smem:[#allocation6 + $0x83]]
        %v546 = vstv %s544
        %v547 = vstv %s545
        %v548 = vsel %vm528, %v546, %v547
        %s549 = sld [smem:[#allocation6 + $0x4]]
        %s550 = sld [smem:[#allocation6 + $0x84]]
        %v551 = vstv %s549
        %v552 = vstv %s550
        %v553 = vsel %vm528, %v551, %v552
        %s554 = sld [smem:[#allocation6 + $0x5]]
        %s555 = sld [smem:[#allocation6 + $0x85]]
        %v556 = vstv %s554
        %v557 = vstv %s555
        %v558 = vsel %vm528, %v556, %v557
        %s559 = sld [smem:[#allocation6 + $0x6]]
        %s560 = sld [smem:[#allocation6 + $0x86]]
        %v561 = vstv %s559
        %v562 = vstv %s560
        %v563 = vsel %vm528, %v561, %v562
        %s564 = sld [smem:[#allocation6 + $0x7]]
        %s565 = sld [smem:[#allocation6 + $0x87]]
        %v566 = vstv %s564
        %v567 = vstv %s565
        %v568 = vsel %vm528, %v566, %v567
        %s569 = sld [smem:[#allocation6 + $0x8]]
        %s570 = sld [smem:[#allocation6 + $0x88]]
        %v571 = vstv %s569
        %v572 = vstv %s570
        %v573 = vsel %vm528, %v571, %v572
        %s574 = sld [smem:[#allocation6 + $0x9]]
        %s575 = sld [smem:[#allocation6 + $0x89]]
        %v576 = vstv %s574
        %v577 = vstv %s575
        %v578 = vsel %vm528, %v576, %v577
        %s579 = sld [smem:[#allocation6 + $0xa]]
        %s580 = sld [smem:[#allocation6 + $0x8a]]
        %v581 = vstv %s579
        %v582 = vstv %s580
        %v583 = vsel %vm528, %v581, %v582
        %s584 = sld [smem:[#allocation6 + $0xb]]
        %s585 = sld [smem:[#allocation6 + $0x8b]]
        %v586 = vstv %s584
        %v587 = vstv %s585
        %v588 = vsel %vm528, %v586, %v587
        %s589 = sld [smem:[#allocation6 + $0xc]]
        %s590 = sld [smem:[#allocation6 + $0x8c]]
        %v591 = vstv %s589
        %v592 = vstv %s590
        %v593 = vsel %vm528, %v591, %v592
        %s594 = sld [smem:[#allocation6 + $0xd]]
        %s595 = sld [smem:[#allocation6 + $0x8d]]
        %v596 = vstv %s594
        %v597 = vstv %s595
        %v598 = vsel %vm528, %v596, %v597
        %s599 = sld [smem:[#allocation6 + $0xe]]
        %s600 = sld [smem:[#allocation6 + $0x8e]]
        %v601 = vstv %s599
        %v602 = vstv %s600
        %v603 = vsel %vm528, %v601, %v602
        %s604 = sld [smem:[#allocation6 + $0xf]]
        %s605 = sld [smem:[#allocation6 + $0x8f]]
        %v606 = vstv %s604
        %v607 = vstv %s605
        %v608 = vsel %vm528, %v606, %v607
        %s609 = sld [smem:[#allocation6 + $0x10]]
        %s610 = sld [smem:[#allocation6 + $0x90]]
        %v611 = vstv %s609
        %v612 = vstv %s610
        %v613 = vsel %vm528, %v611, %v612
        %s614 = sld [smem:[#allocation6 + $0x11]]
        %s615 = sld [smem:[#allocation6 + $0x91]]
        %v616 = vstv %s614
        %v617 = vstv %s615
        %v618 = vsel %vm528, %v616, %v617
        %s619 = sld [smem:[#allocation6 + $0x12]]
        %s620 = sld [smem:[#allocation6 + $0x92]]
        %v621 = vstv %s619
        %v622 = vstv %s620
        %v623 = vsel %vm528, %v621, %v622
        %s624 = sld [smem:[#allocation6 + $0x13]]
        %s625 = sld [smem:[#allocation6 + $0x93]]
        %v626 = vstv %s624
        %v627 = vstv %s625
        %v628 = vsel %vm528, %v626, %v627
        %s629 = sld [smem:[#allocation6 + $0x14]]
        %s630 = sld [smem:[#allocation6 + $0x94]]
        %v631 = vstv %s629
        %v632 = vstv %s630
        %v633 = vsel %vm528, %v631, %v632
        %s634 = sld [smem:[#allocation6 + $0x15]]
        %s635 = sld [smem:[#allocation6 + $0x95]]
        %v636 = vstv %s634
        %v637 = vstv %s635
        %v638 = vsel %vm528, %v636, %v637
        %s639 = sld [smem:[#allocation6 + $0x16]]
        %s640 = sld [smem:[#allocation6 + $0x96]]
        %v641 = vstv %s639
        %v642 = vstv %s640
        %v643 = vsel %vm528, %v641, %v642
        %s644 = sld [smem:[#allocation6 + $0x17]]
        %s645 = sld [smem:[#allocation6 + $0x97]]
        %v646 = vstv %s644
        %v647 = vstv %s645
        %v648 = vsel %vm528, %v646, %v647
        %s649 = sld [smem:[#allocation6 + $0x18]]
        %s650 = sld [smem:[#allocation6 + $0x98]]
        %v651 = vstv %s649
        %v652 = vstv %s650
        %v653 = vsel %vm528, %v651, %v652
        %s654 = sld [smem:[#allocation6 + $0x19]]
        %s655 = sld [smem:[#allocation6 + $0x99]]
        %v656 = vstv %s654
        %v657 = vstv %s655
        %v658 = vsel %vm528, %v656, %v657
        %s659 = sld [smem:[#allocation6 + $0x1a]]
        %s660 = sld [smem:[#allocation6 + $0x9a]]
        %v661 = vstv %s659
        %v662 = vstv %s660
        %v663 = vsel %vm528, %v661, %v662
        %s664 = sld [smem:[#allocation6 + $0x1b]]
        %s665 = sld [smem:[#allocation6 + $0x9b]]
        %v666 = vstv %s664
        %v667 = vstv %s665
        %v668 = vsel %vm528, %v666, %v667
        %s669 = sld [smem:[#allocation6 + $0x1c]]
        %s670 = sld [smem:[#allocation6 + $0x9c]]
        %v671 = vstv %s669
        %v672 = vstv %s670
        %v673 = vsel %vm528, %v671, %v672
        %s674 = sld [smem:[#allocation6 + $0x1d]]
        %s675 = sld [smem:[#allocation6 + $0x9d]]
        %v676 = vstv %s674
        %v677 = vstv %s675
        %v678 = vsel %vm528, %v676, %v677
        %s679 = sld [smem:[#allocation6 + $0x1e]]
        %s680 = sld [smem:[#allocation6 + $0x9e]]
        %v681 = vstv %s679
        %v682 = vstv %s680
        %v683 = vsel %vm528, %v681, %v682
        %s684 = sld [smem:[#allocation6 + $0x1f]]
        %s685 = sld [smem:[#allocation6 + $0x9f]]
        %v686 = vstv %s684
        %v687 = vstv %s685
        %v688 = vsel %vm528, %v686, %v687
        %s689 = sld [smem:[#allocation6 + $0x20]]
        %s690 = sld [smem:[#allocation6 + $0xa0]]
        %v691 = vstv %s689
        %v692 = vstv %s690
        %v693 = vsel %vm528, %v691, %v692
        %s694 = sld [smem:[#allocation6 + $0x21]]
        %s695 = sld [smem:[#allocation6 + $0xa1]]
        %v696 = vstv %s694
        %v697 = vstv %s695
        %v698 = vsel %vm528, %v696, %v697
        %s699 = sld [smem:[#allocation6 + $0x22]]
        %s700 = sld [smem:[#allocation6 + $0xa2]]
        %v701 = vstv %s699
        %v702 = vstv %s700
        %v703 = vsel %vm528, %v701, %v702
        %s704 = sld [smem:[#allocation6 + $0x23]]
        %s705 = sld [smem:[#allocation6 + $0xa3]]
        %v706 = vstv %s704
        %v707 = vstv %s705
        %v708 = vsel %vm528, %v706, %v707
        %s709 = sld [smem:[#allocation6 + $0x24]]
        %s710 = sld [smem:[#allocation6 + $0xa4]]
        %v711 = vstv %s709
        %v712 = vstv %s710
        %v713 = vsel %vm528, %v711, %v712
        %s714 = sld [smem:[#allocation6 + $0x25]]
        %s715 = sld [smem:[#allocation6 + $0xa5]]
        %v716 = vstv %s714
        %v717 = vstv %s715
        %v718 = vsel %vm528, %v716, %v717
        %s719 = sld [smem:[#allocation6 + $0x26]]
        %s720 = sld [smem:[#allocation6 + $0xa6]]
        %v721 = vstv %s719
        %v722 = vstv %s720
        %v723 = vsel %vm528, %v721, %v722
        %s724 = sld [smem:[#allocation6 + $0x27]]
        %s725 = sld [smem:[#allocation6 + $0xa7]]
        %v726 = vstv %s724
        %v727 = vstv %s725
        %v728 = vsel %vm528, %v726, %v727
        %s729 = sld [smem:[#allocation6 + $0x28]]
        %s730 = sld [smem:[#allocation6 + $0xa8]]
        %v731 = vstv %s729
        %v732 = vstv %s730
        %v733 = vsel %vm528, %v731, %v732
        %s734 = sld [smem:[#allocation6 + $0x29]]
        %s735 = sld [smem:[#allocation6 + $0xa9]]
        %v736 = vstv %s734
        %v737 = vstv %s735
        %v738 = vsel %vm528, %v736, %v737
        %s739 = sld [smem:[#allocation6 + $0x2a]]
        %s740 = sld [smem:[#allocation6 + $0xaa]]
        %v741 = vstv %s739
        %v742 = vstv %s740
        %v743 = vsel %vm528, %v741, %v742
        %s744 = sld [smem:[#allocation6 + $0x2b]]
        %s745 = sld [smem:[#allocation6 + $0xab]]
        %v746 = vstv %s744
        %v747 = vstv %s745
        %v748 = vsel %vm528, %v746, %v747
        %s749 = sld [smem:[#allocation6 + $0x2c]]
        %s750 = sld [smem:[#allocation6 + $0xac]]
        %v751 = vstv %s749
        %v752 = vstv %s750
        %v753 = vsel %vm528, %v751, %v752
        %s754 = sld [smem:[#allocation6 + $0x2d]]
        %s755 = sld [smem:[#allocation6 + $0xad]]
        %v756 = vstv %s754
        %v757 = vstv %s755
        %v758 = vsel %vm528, %v756, %v757
        %s759 = sld [smem:[#allocation6 + $0x2e]]
        %s760 = sld [smem:[#allocation6 + $0xae]]
        %v761 = vstv %s759
        %v762 = vstv %s760
        %v763 = vsel %vm528, %v761, %v762
        %s764 = sld [smem:[#allocation6 + $0x2f]]
        %s765 = sld [smem:[#allocation6 + $0xaf]]
        %v766 = vstv %s764
        %v767 = vstv %s765
        %v768 = vsel %vm528, %v766, %v767
        %s769 = sld [smem:[#allocation6 + $0x30]]
        %s770 = sld [smem:[#allocation6 + $0xb0]]
        %v771 = vstv %s769
        %v772 = vstv %s770
        %v773 = vsel %vm528, %v771, %v772
        %v774 = vadd.s32 %v293, 128
        %vm775 = vcmp.lt.s32.totalorder %v293, 0
        %v776 = vsub.s32 0, %v293
        %v777 = vsel %vm775, %v776, %v293
        %v778 = vshrl.u32 %v777, 4
        %v779 = vand.u32 %v777, 15
        %v780 = vsub.s32 0, %v779
        %v781 = vsel %vm775, %v780, %v779
        %vm782 = vcmp.lt.s32.totalorder %v774, 0
        %v783 = vsub.s32 0, %v774
        %v784 = vsel %vm782, %v783, %v774
        %v785 = vshrl.u32 %v784, 4
        %v786 = vand.u32 %v784, 15
        %v787 = vsub.s32 0, %v786
        %v788 = vsel %vm782, %v787, %v786
        %vm789 = vcmp.ne.s32.totalorder %v781, 0
        %vm790 = vcmp.ne.s32.totalorder %v788, 0
        %vm791 = vcmp.lt.s32.totalorder %v781, 0
        %vm792 = vcmp.lt.s32.totalorder %v788, 0
        %vm793 = vmand %vm791, %vm789
        %vm794 = vmand %vm792, %vm790
        %v795 = vadd.s32 %v781, 16
        %v796 = vadd.s32 %v788, 16
        %v797 = vsel %vm793, %v795, %v781
        %v798 = vsel %vm794, %v796, %v788
        %v799 = vadd.s32 %v797, 4294967293
        %v800 = vadd.s32 %v798, 4294967293
        %vm801 = vcmp.ge.s32.totalorder %v799, 0
        %vm802 = vcmp.ge.s32.totalorder %v800, 0
        %vm803 = vcmp.lt.s32.totalorder %v799, 16
        %vm804 = vcmp.lt.s32.totalorder %v800, 16
        %vm805 = vmand %vm801, %vm803
        %vm806 = vmand %vm802, %vm804
        %809 = vrot.lane.b32.xlu0 %v524, 3
        %v810 = vpop.permute.xlu0 %809
        %811 = vrot.lane.b32.xlu0 %v525, 3
        %v812 = vpop.permute.xlu0 %811
        %vm813 = vcmask 23552
        %v814 = vsel %vm813, %v810, %v812
        %v817 = vsel %vm813, 0.0, %v810
        %v818 = vsel %vm805, 1, 0
        %v819 = vsel %vm806, 1, 0
        %vm820 = vcmp.eq.s32.totalorder %v818, 1
        %vm821 = vcmp.eq.s32.totalorder %v819, 1
        %v822 = vsel %vm820, %v817, 0.0
        %v823 = vsel %vm821, %v814, 0.0
        %v824 = vadd.s32 %v797, 4294967294
        %v825 = vadd.s32 %v798, 4294967294
        %vm826 = vcmp.ge.s32.totalorder %v824, 0
        %vm827 = vcmp.ge.s32.totalorder %v825, 0
        %vm828 = vcmp.lt.s32.totalorder %v824, 16
        %vm829 = vcmp.lt.s32.totalorder %v825, 16
        %vm830 = vmand %vm826, %vm828
        %vm831 = vmand %vm827, %vm829
        %832 = vrot.lane.b32.xlu0 %v524, 2
        %v833 = vpop.permute.xlu0 %832
        %834 = vrot.lane.b32.xlu0 %v525, 2
        %v835 = vpop.permute.xlu0 %834
        %vm836 = vcmask 15360
        %v837 = vsel %vm836, %v833, %v835
        %v840 = vsel %vm836, 0.0, %v833
        %v841 = vsel %vm830, 1, 0
        %v842 = vsel %vm831, 1, 0
        %vm843 = vcmp.eq.s32.totalorder %v841, 1
        %vm844 = vcmp.eq.s32.totalorder %v842, 1
        %v845 = vsel %vm843, %v840, 0.0
        %v846 = vsel %vm844, %v837, 0.0
        %v847 = vadd.s32 %v797, 4294967295
        %v848 = vadd.s32 %v798, 4294967295
        %vm849 = vcmp.ge.s32.totalorder %v847, 0
        %vm850 = vcmp.ge.s32.totalorder %v848, 0
        %vm851 = vcmp.lt.s32.totalorder %v847, 16
        %vm852 = vcmp.lt.s32.totalorder %v848, 16
        %vm853 = vmand %vm849, %vm851
        %vm854 = vmand %vm850, %vm852
        %855 = vrot.lane.b32.xlu0 %v524, 1
        %v856 = vpop.permute.xlu0 %855
        %857 = vrot.lane.b32.xlu0 %v525, 1
        %v858 = vpop.permute.xlu0 %857
        %vm859 = vcmask 7168
        %v860 = vsel %vm859, %v856, %v858
        %v863 = vsel %vm859, 0.0, %v856
        %v864 = vsel %vm853, 1, 0
        %v865 = vsel %vm854, 1, 0
        %vm866 = vcmp.eq.s32.totalorder %v864, 1
        %vm867 = vcmp.eq.s32.totalorder %v865, 1
        %v868 = vsel %vm866, %v863, 0.0
        %v869 = vsel %vm867, %v860, 0.0
        %v870 = vadd.s32 %v797, 1
        %v871 = vadd.s32 %v798, 1
        %vm872 = vcmp.ge.s32.totalorder %v870, 0
        %vm873 = vcmp.ge.s32.totalorder %v871, 0
        %vm874 = vcmp.lt.s32.totalorder %v870, 16
        %vm875 = vcmp.lt.s32.totalorder %v871, 16
        %vm876 = vmand %vm872, %vm874
        %vm877 = vmand %vm873, %vm875
        %878 = vrot.lane.b32.xlu0 %v524, 127
        %v879 = vpop.permute.xlu0 %878
        %880 = vrot.lane.b32.xlu0 %v525, 127
        %v881 = vpop.permute.xlu0 %880
        %vm882 = vcmask 1039360
        %v883 = vsel %vm882, %v879, %v881
        %v886 = vsel %vm882, %v881, 0.0
        %v887 = vsel %vm876, 1, 0
        %v888 = vsel %vm877, 1, 0
        %vm889 = vcmp.eq.s32.totalorder %v887, 1
        %vm890 = vcmp.eq.s32.totalorder %v888, 1
        %v891 = vsel %vm889, %v883, 0.0
        %v892 = vsel %vm890, %v886, 0.0
        %v893 = vadd.s32 %v797, 2
        %v894 = vadd.s32 %v798, 2
        %vm895 = vcmp.ge.s32.totalorder %v893, 0
        %vm896 = vcmp.ge.s32.totalorder %v894, 0
        %vm897 = vcmp.lt.s32.totalorder %v893, 16
        %vm898 = vcmp.lt.s32.totalorder %v894, 16
        %vm899 = vmand %vm895, %vm897
        %vm900 = vmand %vm896, %vm898
        %901 = vrot.lane.b32.xlu0 %v524, 126
        %v902 = vpop.permute.xlu0 %901
        %903 = vrot.lane.b32.xlu0 %v525, 126
        %v904 = vpop.permute.xlu0 %903
        %vm905 = vcmask 1031168
        %v906 = vsel %vm905, %v902, %v904
        %v909 = vsel %vm905, %v904, 0.0
        %v910 = vsel %vm899, 1, 0
        %v911 = vsel %vm900, 1, 0
        %vm912 = vcmp.eq.s32.totalorder %v910, 1
        %vm913 = vcmp.eq.s32.totalorder %v911, 1
        %v914 = vsel %vm912, %v906, 0.0
        %v915 = vsel %vm913, %v909, 0.0
        %v916 = vadd.s32 %v797, 3
        %v917 = vadd.s32 %v798, 3
        %vm918 = vcmp.ge.s32.totalorder %v916, 0
        %vm919 = vcmp.ge.s32.totalorder %v917, 0
        %vm920 = vcmp.lt.s32.totalorder %v916, 16
        %vm921 = vcmp.lt.s32.totalorder %v917, 16
        %vm922 = vmand %vm918, %vm920
        %vm923 = vmand %vm919, %vm921
        %924 = vrot.lane.b32.xlu0 %v524, 125
        %v925 = vpop.permute.xlu0 %924
        %926 = vrot.lane.b32.xlu0 %v525, 125
        %v927 = vpop.permute.xlu0 %926
        %vm928 = vcmask 1022976
        %v929 = vsel %vm928, %v925, %v927
        %v932 = vsel %vm928, %v927, 0.0
        %v933 = vsel %vm922, 1, 0
        %v934 = vsel %vm923, 1, 0
        %vm935 = vcmp.eq.s32.totalorder %v933, 1
        %vm936 = vcmp.eq.s32.totalorder %v934, 1
        %v937 = vsel %vm935, %v929, 0.0
        %v938 = vsel %vm936, %v932, 0.0
        %v939 = vmul.f32 %v533, %v822
        %v940 = vmul.f32 %v533, %v823
        %v941 = vmul.f32 %v538, %v845
        %v942 = vmul.f32 %v538, %v846
        %v943 = vmul.f32 %v543, %v868
        %v944 = vmul.f32 %v543, %v869
        %v945 = vmul.f32 %v548, %v524
        %v946 = vmul.f32 %v548, %v525
        %v947 = vmul.f32 %v553, %v891
        %v948 = vmul.f32 %v553, %v892
        %v949 = vmul.f32 %v558, %v914
        %v950 = vmul.f32 %v558, %v915
        %v951 = vmul.f32 %v563, %v937
        %v952 = vmul.f32 %v563, %v938
        %v953 = vadd.f32 %v939, %v941
        %v954 = vadd.f32 %v940, %v942
        %v955 = vadd.f32 %v943, %v945
        %v956 = vadd.f32 %v944, %v946
        %v957 = vadd.f32 %v947, %v949
        %v958 = vadd.f32 %v948, %v950
        %v959 = vadd.f32 %v953, %v955
        %v960 = vadd.f32 %v954, %v956
        %v961 = vadd.f32 %v957, %v951
        %v962 = vadd.f32 %v958, %v952
        %v963 = vadd.f32 %v959, %v961
        %v964 = vadd.f32 %v960, %v962
        %967 = vrot.lane.b32.xlu0 %v963, 48
        %v968 = vpop.permute.xlu0 %967
        %969 = vrot.lane.b32.xlu0 %v964, 48
        %v970 = vpop.permute.xlu0 %969
        %vm971 = vcmask 392192
        %v972 = vsel %vm971, %v968, %v970
        %v975 = vsel %vm971, 0.0, %v968
        %v976 = vmul.f32 %v568, %v822
        %v977 = vmul.f32 %v568, %v823
        %v978 = vmul.f32 %v573, %v845
        %v979 = vmul.f32 %v573, %v846
        %v980 = vmul.f32 %v578, %v868
        %v981 = vmul.f32 %v578, %v869
        %v982 = vmul.f32 %v583, %v524
        %v983 = vmul.f32 %v583, %v525
        %v984 = vmul.f32 %v588, %v891
        %v985 = vmul.f32 %v588, %v892
        %v986 = vmul.f32 %v593, %v914
        %v987 = vmul.f32 %v593, %v915
        %v988 = vmul.f32 %v598, %v937
        %v989 = vmul.f32 %v598, %v938
        %v990 = vadd.f32 %v976, %v978
        %v991 = vadd.f32 %v977, %v979
        %v992 = vadd.f32 %v980, %v982
        %v993 = vadd.f32 %v981, %v983
        %v994 = vadd.f32 %v984, %v986
        %v995 = vadd.f32 %v985, %v987
        %v996 = vadd.f32 %v990, %v992
        %v997 = vadd.f32 %v991, %v993
        %v998 = vadd.f32 %v994, %v988
        %v999 = vadd.f32 %v995, %v989
        %v1000 = vadd.f32 %v996, %v998
        %v1001 = vadd.f32 %v997, %v999
        %1004 = vrot.lane.b32.xlu0 %v1000, 32
        %v1005 = vpop.permute.xlu0 %1004
        %1006 = vrot.lane.b32.xlu0 %v1001, 32
        %v1007 = vpop.permute.xlu0 %1006
        %vm1008 = vcmask 261120
        %v1009 = vsel %vm1008, %v1005, %v1007
        %v1012 = vsel %vm1008, 0.0, %v1005
        %v1013 = vmul.f32 %v603, %v822
        %v1014 = vmul.f32 %v603, %v823
        %v1015 = vmul.f32 %v608, %v845
        %v1016 = vmul.f32 %v608, %v846
        %v1017 = vmul.f32 %v613, %v868
        %v1018 = vmul.f32 %v613, %v869
        %v1019 = vmul.f32 %v618, %v524
        %v1020 = vmul.f32 %v618, %v525
        %v1021 = vmul.f32 %v623, %v891
        %v1022 = vmul.f32 %v623, %v892
        %v1023 = vmul.f32 %v628, %v914
        %v1024 = vmul.f32 %v628, %v915
        %v1025 = vmul.f32 %v633, %v937
        %v1026 = vmul.f32 %v633, %v938
        %v1027 = vadd.f32 %v1013, %v1015
        %v1028 = vadd.f32 %v1014, %v1016
        %v1029 = vadd.f32 %v1017, %v1019
        %v1030 = vadd.f32 %v1018, %v1020
        %v1031 = vadd.f32 %v1021, %v1023
        %v1032 = vadd.f32 %v1022, %v1024
        %v1033 = vadd.f32 %v1027, %v1029
        %v1034 = vadd.f32 %v1028, %v1030
        %v1035 = vadd.f32 %v1031, %v1025
        %v1036 = vadd.f32 %v1032, %v1026
        %v1037 = vadd.f32 %v1033, %v1035
        %v1038 = vadd.f32 %v1034, %v1036
        %1041 = vrot.lane.b32.xlu0 %v1037, 16
        %v1042 = vpop.permute.xlu0 %1041
        %1043 = vrot.lane.b32.xlu0 %v1038, 16
        %v1044 = vpop.permute.xlu0 %1043
        %vm1045 = vcmask 130048
        %v1046 = vsel %vm1045, %v1042, %v1044
        %v1049 = vsel %vm1045, 0.0, %v1042
        %v1050 = vmul.f32 %v638, %v822
        %v1051 = vmul.f32 %v638, %v823
        %v1052 = vmul.f32 %v643, %v845
        %v1053 = vmul.f32 %v643, %v846
        %v1054 = vmul.f32 %v648, %v868
        %v1055 = vmul.f32 %v648, %v869
        %v1056 = vmul.f32 %v653, %v524
        %v1057 = vmul.f32 %v653, %v525
        %v1058 = vmul.f32 %v658, %v891
        %v1059 = vmul.f32 %v658, %v892
        %v1060 = vmul.f32 %v663, %v914
        %v1061 = vmul.f32 %v663, %v915
        %v1062 = vmul.f32 %v668, %v937
        %v1063 = vmul.f32 %v668, %v938
        %v1064 = vadd.f32 %v1050, %v1052
        %v1065 = vadd.f32 %v1051, %v1053
        %v1066 = vadd.f32 %v1054, %v1056
        %v1067 = vadd.f32 %v1055, %v1057
        %v1068 = vadd.f32 %v1058, %v1060
        %v1069 = vadd.f32 %v1059, %v1061
        %v1070 = vadd.f32 %v1064, %v1066
        %v1071 = vadd.f32 %v1065, %v1067
        %v1072 = vadd.f32 %v1068, %v1062
        %v1073 = vadd.f32 %v1069, %v1063
        %v1074 = vadd.f32 %v1070, %v1072
        %v1075 = vadd.f32 %v1071, %v1073
        %v1076 = vmul.f32 %v673, %v822
        %v1077 = vmul.f32 %v673, %v823
        %v1078 = vmul.f32 %v678, %v845
        %v1079 = vmul.f32 %v678, %v846
        %v1080 = vmul.f32 %v683, %v868
        %v1081 = vmul.f32 %v683, %v869
        %v1082 = vmul.f32 %v688, %v524
        %v1083 = vmul.f32 %v688, %v525
        %v1084 = vmul.f32 %v693, %v891
        %v1085 = vmul.f32 %v693, %v892
        %v1086 = vmul.f32 %v698, %v914
        %v1087 = vmul.f32 %v698, %v915
        %v1088 = vmul.f32 %v703, %v937
        %v1089 = vmul.f32 %v703, %v938
        %v1090 = vadd.f32 %v1076, %v1078
        %v1091 = vadd.f32 %v1077, %v1079
        %v1092 = vadd.f32 %v1080, %v1082
        %v1093 = vadd.f32 %v1081, %v1083
        %v1094 = vadd.f32 %v1084, %v1086
        %v1095 = vadd.f32 %v1085, %v1087
        %v1096 = vadd.f32 %v1090, %v1092
        %v1097 = vadd.f32 %v1091, %v1093
        %v1098 = vadd.f32 %v1094, %v1088
        %v1099 = vadd.f32 %v1095, %v1089
        %v1100 = vadd.f32 %v1096, %v1098
        %v1101 = vadd.f32 %v1097, %v1099
        %1104 = vrot.lane.b32.xlu0 %v1100, 112
        %v1105 = vpop.permute.xlu0 %1104
        %1106 = vrot.lane.b32.xlu0 %v1101, 112
        %v1107 = vpop.permute.xlu0 %1106
        %vm1108 = vcmask 916480
        %v1109 = vsel %vm1108, %v1105, %v1107
        %v1112 = vsel %vm1108, %v1107, 0.0
        %v1113 = vmul.f32 %v708, %v822
        %v1114 = vmul.f32 %v708, %v823
        %v1115 = vmul.f32 %v713, %v845
        %v1116 = vmul.f32 %v713, %v846
        %v1117 = vmul.f32 %v718, %v868
        %v1118 = vmul.f32 %v718, %v869
        %v1119 = vmul.f32 %v723, %v524
        %v1120 = vmul.f32 %v723, %v525
        %v1121 = vmul.f32 %v728, %v891
        %v1122 = vmul.f32 %v728, %v892
        %v1123 = vmul.f32 %v733, %v914
        %v1124 = vmul.f32 %v733, %v915
        %v1125 = vmul.f32 %v738, %v937
        %v1126 = vmul.f32 %v738, %v938
        %v1127 = vadd.f32 %v1113, %v1115
        %v1128 = vadd.f32 %v1114, %v1116
        %v1129 = vadd.f32 %v1117, %v1119
        %v1130 = vadd.f32 %v1118, %v1120
        %v1131 = vadd.f32 %v1121, %v1123
        %v1132 = vadd.f32 %v1122, %v1124
        %v1133 = vadd.f32 %v1127, %v1129
        %v1134 = vadd.f32 %v1128, %v1130
        %v1135 = vadd.f32 %v1131, %v1125
        %v1136 = vadd.f32 %v1132, %v1126
        %v1137 = vadd.f32 %v1133, %v1135
        %v1138 = vadd.f32 %v1134, %v1136
        %1141 = vrot.lane.b32.xlu0 %v1137, 96
        %v1142 = vpop.permute.xlu0 %1141
        %1143 = vrot.lane.b32.xlu0 %v1138, 96
        %v1144 = vpop.permute.xlu0 %1143
        %vm1145 = vcmask 785408
        %v1146 = vsel %vm1145, %v1142, %v1144
        %v1149 = vsel %vm1145, %v1144, 0.0
        %v1150 = vmul.f32 %v743, %v822
        %v1151 = vmul.f32 %v743, %v823
        %v1152 = vmul.f32 %v748, %v845
        %v1153 = vmul.f32 %v748, %v846
        %v1154 = vmul.f32 %v753, %v868
        %v1155 = vmul.f32 %v753, %v869
        %v1156 = vmul.f32 %v758, %v524
        %v1157 = vmul.f32 %v758, %v525
        %v1158 = vmul.f32 %v763, %v891
        %v1159 = vmul.f32 %v763, %v892
        %v1160 = vmul.f32 %v768, %v914
        %v1161 = vmul.f32 %v768, %v915
        %v1162 = vmul.f32 %v773, %v937
        %v1163 = vmul.f32 %v773, %v938
        %v1164 = vadd.f32 %v1150, %v1152
        %v1165 = vadd.f32 %v1151, %v1153
        %v1166 = vadd.f32 %v1154, %v1156
        %v1167 = vadd.f32 %v1155, %v1157
        %v1168 = vadd.f32 %v1158, %v1160
        %v1169 = vadd.f32 %v1159, %v1161
        %v1170 = vadd.f32 %v1164, %v1166
        %v1171 = vadd.f32 %v1165, %v1167
        %v1172 = vadd.f32 %v1168, %v1162
        %v1173 = vadd.f32 %v1169, %v1163
        %v1174 = vadd.f32 %v1170, %v1172
        %v1175 = vadd.f32 %v1171, %v1173
        %1178 = vrot.lane.b32.xlu0 %v1174, 80
        %v1179 = vpop.permute.xlu0 %1178
        %1180 = vrot.lane.b32.xlu0 %v1175, 80
        %v1181 = vpop.permute.xlu0 %1180
        %vm1182 = vcmask 654336
        %v1183 = vsel %vm1182, %v1179, %v1181
        %v1186 = vsel %vm1182, %v1181, 0.0
        %v1187 = vadd.f32 %v975, %v1012
        %v1188 = vadd.f32 %v972, %v1009
        %v1189 = vadd.f32 %v1049, %v1074
        %v1190 = vadd.f32 %v1046, %v1075
        %v1191 = vadd.f32 %v1109, %v1146
        %v1192 = vadd.f32 %v1112, %v1149
        %v1193 = vadd.f32 %v1187, %v1189
        %v1194 = vadd.f32 %v1188, %v1190
        %v1195 = vadd.f32 %v1191, %v1183
        %v1196 = vadd.f32 %v1192, %v1186
        %v1197 = vadd.f32 %v1193, %v1195
        %v1198 = vadd.f32 %v1194, %v1196
        %v1201 = vrot.slane %v1197, 1
        %v1202 = vrot.slane %v1198, 1
        %v1205 = vadd.f32 %v1197, %v1201
        %v1206 = vadd.f32 %v1198, %v1202
        %v1207 = vxor.u32 %v1205, 2147483648
        %v1208 = vxor.u32 %v1206, 2147483648
        %v1209 = vmul.f32 %v1207, 1.442695
        %v1210 = vpow.pop %v1209
        %v1211 = vmul.f32 %v1208, 1.442695
        %v1212 = vpow.pop %v1211
        %v1213 = vadd.f32 %v1210, 1.0
        %v1214 = vadd.f32 %v1212, 1.0
        %v1215 = vrcp.pop %v1213
        %v1216 = vmul.f32 1.0, %v1215
        %v1217 = vrcp.pop %v1214
        %v1218 = vmul.f32 1.0, %v1217
        %v1219 = vadd.f32 %v1216, 1.0
        %v1220 = vadd.f32 %v1218, 1.0
        %v1221 = vmul.f32 %v496, %v496
        %v1222 = vmul.f32 %v497, %v497
        %v1223 = vlaneseq
        %v1224 = vshrl.u32 %v1223, 7
        %v1225 = vsub.s32 0, %v1224
        %v1226 = vrot.slane %v1219, %v1225
        %v1227 = vlaneseq
        %v1228 = vshrl.u32 %v1227, 7
        %v1229 = vsub.s32 0, %v1228
        %v1230 = vrot.slane %v1220, %v1229
        %v1231 = vmul.f32 %v1221, %v1226
        %v1232 = vmul.f32 %v1222, %v1230
        %1233 = vst [vmem:[%s281] sm:$0xff] %v1231
        %1234 = vst [vmem:[%s281 + $0x8] sm:$0xff] %v1232
        %s1235 = sand.u32 %s163, 1
        %s1236 = scalar_lea.sflag [#allocation4], %s1235
        %s1237 = sand.u32 %s163, 1
        %s1238 = smul.addr %s1237, 16
        %s1239 = scalar_lea.vmem [#allocation7], %s1238
        // Predicated region
        $region53: #{tpu_custom_call.1} parent=43 // pred_check
          %p1240 = pneg %p173
        $region54: #{tpu_custom_call.1} parent=43 // pred_check_branch
          %1242 = sbr.rel (%p1240) target = $region56
        $region55: #{tpu_custom_call.1} parent=43 // pred_region
          %s1244 = ssub.s32 256, 256
          %1245 = vsyncadd %s1236, %s1244
          %s1246 = smul.addr %s24, 2
          %s1247 = smul.addr %s1246, 128
          %s1248 = scalar_lea.hbm %s6, %s1247
          %s1250 = sshll.u32 %s1239, 4
          %s1251 = int_to_ptr.vmem [resolvable:$true] %s1250
          %1253 = dma.vmem_to_hbm [thread:$0]  %s1251, 256, %s1248, %s1236
        $region56: #{tpu_custom_call.1} parent=43 // pred_fallthru
          _
      $region44: #{tpu_custom_call.1} parent=5 // pred_fallthru
        _
      %p1254 = scmp.le.s32.totalorder 2, %s19
      // Predicated region
      $region57: #{tpu_custom_call.1} parent=5 // pred_check
        %p1255 = pneg %p1254
      $region58: #{tpu_custom_call.1} parent=5 // pred_check_branch
        %1257 = sbr.rel (%p1255) target = $region60
      $region59: #{tpu_custom_call.1} parent=5 // pred_region
        %s1258 = ssub.s32 %s19, 2
        // Predicated region
        $region61: #{tpu_custom_call.1} parent=59 // pred_check
          %p1259 = pneg %p179
        $region62: #{tpu_custom_call.1} parent=59 // pred_check_branch
          %1261 = sbr.rel (%p1259) target = $region64
        $region63: #{tpu_custom_call.1} parent=59 // pred_region
          %s1262 = sand.u32 %s164, 1
          %s1263 = scalar_lea.sflag [#allocation4], %s1262
          %s1264 = sand.u32 %s164, 1
          %s1265 = smul.addr %s1264, 16
          %s1266 = scalar_lea.vmem [#allocation7], %s1265
          %1267 = dma.done %s1263, 256
        $region64: #{tpu_custom_call.1} parent=59 // pred_fallthru
          _
      $region60: #{tpu_custom_call.1} parent=5 // pred_fallthru
        _
    $region6: #{tpu_custom_call.1} parent=1 // loop_footer
      %s23 = sadd.s32 1, %s19
    $region7: #{tpu_custom_call.1} parent=1 // loop_footer_branch
      %18 = sbr.rel target = $region3
    $region8: #{tpu_custom_call.1} parent=1 // loop_exit
      _
    %1268 = vsyncpa [#allocation3], 1
    %s1269 = scalar_lea.sflag [#allocation3], 1
    %1270 = vsyncpa %s1269, 1
    %1271 = vsyncpa [#allocation4], 1
    %s1272 = scalar_lea.sflag [#allocation4], 1
    %1273 = vsyncpa %s1272, 1
    %1274 = vsyncpa [#allocation5], 1
    %s1275 = scalar_lea.sflag [#allocation5], 1
    %1276 = vsyncpa %s1275, 1

</llo_original>
